<compile_context>
chip_gen: v7x
topology: tpu7x:2x2x1
jax: 0.10.0
libtpu: 0.0.40
codegen_flags: <defaults>
</compile_context>

<pallas_src>
import functools

import jax
import jax.numpy as jnp
from jax.experimental import pallas as pl
from jax.experimental.pallas import tpu as pltpu

NEG_SLOPE = 0.01  # nn.LeakyReLU() default
_EGO_RESIDENT_BYTES = 8 * 1024 * 1024  # keep full ego VMEM-resident below this


def _leaky_relu(x):
    return jnp.where(x >= 0, x, NEG_SLOPE * x)


def _round_up(x, m):
    return ((x + m - 1) // m) * m


def _bi_aggregator_kernel(a_ref, e_red_ref, e_row_ref, w1_ref, b1_ref,
                          w2_ref, b2_ref, o_ref, side_acc, *, tk, ego_resident):
    """Fused: side = A @ E (accumulated over grid axis 1), then bi-aggregation.

    grid = (Nr // tm, Nc // tk); axis 0 tiles output rows (parallel), axis 1 is
    the reduction over column blocks of the adjacency matrix (arbitrary).
    """
    k = pl.program_id(1)

    @pl.when(k == 0)
    def _():
        side_acc[...] = jnp.zeros_like(side_acc)

    if ego_resident:
        # Full (Nc, D) ego lives in VMEM (constant block index => fetched once);
        # slice out the rows belonging to this reduction step.
        start = pl.multiple_of(k * tk, tk)
        e_blk = e_red_ref[pl.ds(start, tk), :]
    else:
        e_blk = e_red_ref[...]

    # f32 x f32 operands, f32 accumulation on the MXU (kernel is HBM-bound on A,
    # so MXU pass count is irrelevant).
    side_acc[...] += jnp.dot(a_ref[...], e_blk,
                             preferred_element_type=jnp.float32)

    @pl.when(k == pl.num_programs(1) - 1)
    def _():
        ego = e_row_ref[...]          # (tm, D) rows of ego for this output tile
        side = side_acc[...]          # (tm, D) f32

        sum_emb = _leaky_relu(
            jnp.dot(ego + side, w1_ref[...], preferred_element_type=jnp.float32)
            + b1_ref[...])
        bi_emb = _leaky_relu(
            jnp.dot(ego * side, w2_ref[...], preferred_element_type=jnp.float32)
            + b2_ref[...])

        # message_dropout in eval mode is identity.
        # TODO(synk): training-mode dropout (random mask + 1/(1-p) scale) not applied.
        o_ref[...] = (sum_emb + bi_emb).astype(o_ref.dtype)


@functools.partial(jax.jit, static_argnames=("tm", "tk"))
def bi_aggregator(norm_matrix, ego, w1_t, b1, w2_t, b2, *, tm=256, tk=2048):
    N, D = ego.shape
    assert norm_matrix.shape == (N, N)
    assert tm % 8 == 0, "tm must be a multiple of 8 (f32 sublane tile)"
    assert tk % 128 == 0, "tk must be a multiple of 128 (lane tile)"

    # Clamp tiles to the (rounded-up) problem size, keep alignment.
    tm = min(tm, _round_up(N, 8))
    tk = min(tk, _round_up(N, 128))

    # Pad rows to a tm multiple and reduction columns to a tk multiple
    # (independently -> no lcm blow-up).  Zero-padded columns/rows contribute
    # nothing to the reduction; padded output rows are sliced off.
    Nr = _round_up(N, tm)
    Nc = _round_up(N, tk)
    pad_r = Nr - N
    pad_c = Nc - N

    a = norm_matrix
    e_red = ego
    e_row = ego
    if pad_r or pad_c:
        a = jnp.pad(a, ((0, pad_r), (0, pad_c)))
    if pad_c:
        e_red = jnp.pad(e_red, ((0, pad_c), (0, 0)))
    if pad_r:
        e_row = jnp.pad(e_row, ((0, pad_r), (0, 0)))

    ego_resident = (Nc * D * 4) <= _EGO_RESIDENT_BYTES
    if ego_resident:
        e_red_spec = pl.BlockSpec((Nc, D), lambda i, k: (0, 0))   # fetched once
    else:
        e_red_spec = pl.BlockSpec((tk, D), lambda i, k: (k, 0))

    # Rough VMEM budget (double-buffered streams) -> compiler limit with
    # headroom, capped safely below v7x's 64 MiB physical VMEM.
    est = 2 * tm * tk * 4                              # A tiles (f32, 2 bufs)
    est += 2 * (Nc if ego_resident else tk) * D * 4    # ego reduction operand
    est += 2 * tm * D * 4                              # ego rows for epilogue
    est += 2 * (2 * D * D * 4 + 2 * D * 4)             # W1, W2, b1, b2
    est += tm * D * 4                                  # side accumulator
    est += 2 * tm * D * 4                              # output tiles
    vmem_limit = int(min(max(2 * est, 32 * 1024 * 1024), 48 * 1024 * 1024))

    grid = (Nr // tm, Nc // tk)
    kernel = functools.partial(_bi_aggregator_kernel, tk=tk,
                               ego_resident=ego_resident)

    out = pl.pallas_call(
        kernel,
        out_shape=jax.ShapeDtypeStruct((Nr, D), ego.dtype),
        grid_spec=pltpu.PrefetchScalarGridSpec(
            num_scalar_prefetch=0,
            grid=grid,
            in_specs=[
                pl.BlockSpec((tm, tk), lambda i, k: (i, k)),   # adjacency tile
                e_red_spec,                                    # ego for reduction
                pl.BlockSpec((tm, D), lambda i, k: (i, 0)),    # ego rows for out tile
                pl.BlockSpec((D, D), lambda i, k: (0, 0)),     # W1^T
                pl.BlockSpec((1, D), lambda i, k: (0, 0)),     # b1
                pl.BlockSpec((D, D), lambda i, k: (0, 0)),     # W2^T
                pl.BlockSpec((1, D), lambda i, k: (0, 0)),     # b2
            ],
            out_specs=pl.BlockSpec((tm, D), lambda i, k: (i, 0)),
            scratch_shapes=[pltpu.VMEM((tm, D), jnp.float32)],
        ),
        compiler_params=pltpu.CompilerParams(
            dimension_semantics=("parallel", "arbitrary"),
            vmem_limit_bytes=vmem_limit),
    )(a, e_red, e_row, w1_t, b1, w2_t, b2)

    return out[:N]


def reference(norm_matrix, ego, w1_t, b1, w2_t, b2):
    side = jnp.dot(norm_matrix, ego, preferred_element_type=jnp.float32)
    sum_emb = _leaky_relu((ego + side) @ w1_t + b1)
    bi_emb = _leaky_relu((ego * side) @ w2_t + b2)
    return sum_emb + bi_emb


if __name__ == "__main__":
    key = jax.random.PRNGKey(0)
    N, D = 256, 32  # num nodes, input_dim == output_dim

    k_a, k_e, k_w1, k_b1, k_w2, k_b2 = jax.random.split(key, 6)

    # Sparse normalized adjacency materialized as a dense matrix (synthetic).
    norm_matrix = jax.random.uniform(k_a, (N, N), jnp.float32)
    norm_matrix = norm_matrix * (norm_matrix > 0.9)          # ~10% density
    norm_matrix = norm_matrix / (norm_matrix.sum(axis=1, keepdims=True) + 1e-6)

    ego = jax.random.normal(k_e, (N, D), jnp.float32)

    # Deterministic parameter init (nn.Linear shapes: W (out,in), b (out,)).
    # Pass transposed weights so the kernel does x @ Wt + b.
    scale = 1.0 / jnp.sqrt(D)
    w1_t = jax.random.uniform(k_w1, (D, D), jnp.float32, -1, 1) * scale
    b1 = jax.random.uniform(k_b1, (1, D), jnp.float32, -1, 1) * scale
    w2_t = jax.random.uniform(k_w2, (D, D), jnp.float32, -1, 1) * scale
    b2 = jax.random.uniform(k_b2, (1, D), jnp.float32, -1, 1) * scale

    out = bi_aggregator(norm_matrix, ego, w1_t, b1, w2_t, b2)
    out = jax.block_until_ready(out)

    ref = reference(norm_matrix, ego, w1_t, b1, w2_t, b2)
    assert out.shape == ref.shape, (out.shape, ref.shape)
    assert jnp.allclose(out, ref, atol=2e-4, rtol=2e-4), \
        "kernel mismatch vs f32 reference"

    print("KERNEL_OK")
</pallas_src>

<mosaic_0001>
module attributes {stable_mosaic.version = 11 : i64} {
  func.func @_bi_aggregator_kernel(%arg0: i32, %arg1: i32, %arg2: memref<256x256xf32, #tpu.memory_space<vmem>>, %arg3: memref<256x32xf32, #tpu.memory_space<vmem>>, %arg4: memref<256x32xf32, #tpu.memory_space<vmem>>, %arg5: memref<32x32xf32, #tpu.memory_space<vmem>>, %arg6: memref<1x32xf32, #tpu.memory_space<vmem>>, %arg7: memref<32x32xf32, #tpu.memory_space<vmem>>, %arg8: memref<1x32xf32, #tpu.memory_space<vmem>>, %arg9: memref<256x32xf32, #tpu.memory_space<vmem>>, %arg10: memref<256x32xf32, #tpu.memory_space<vmem>>) attributes {dimension_semantics = [#tpu.dimension_semantics<parallel>, #tpu.dimension_semantics<arbitrary>], iteration_bounds = array<i64: 1, 1>, scalar_prefetch = 0 : i64, scratch_operands = 1 : i64, tpu.core_type = #tpu.core_type<tc>, window_params = [{transform_indices = @transform_0, window_bounds = array<i64: 256, 256>}, {pipeline_mode = #tpu.pipeline_mode<synchronous>, transform_indices = @transform_1, window_bounds = array<i64: 256, 32>}, {transform_indices = @transform_2, window_bounds = array<i64: 256, 32>}, {pipeline_mode = #tpu.pipeline_mode<synchronous>, transform_indices = @transform_3, window_bounds = array<i64: 32, 32>}, {pipeline_mode = #tpu.pipeline_mode<synchronous>, transform_indices = @transform_4, window_bounds = array<i64: 1, 32>}, {pipeline_mode = #tpu.pipeline_mode<synchronous>, transform_indices = @transform_5, window_bounds = array<i64: 32, 32>}, {pipeline_mode = #tpu.pipeline_mode<synchronous>, transform_indices = @transform_6, window_bounds = array<i64: 1, 32>}, {transform_indices = @transform_7, window_bounds = array<i64: 256, 32>}]} {
    %c0_i32 = arith.constant 0 : i32
    %0 = arith.cmpi eq, %arg1, %c0_i32 : i32
    %1 = arith.extui %0 : i1 to i32
    %c0_i32_0 = arith.constant 0 : i32
    %2 = arith.cmpi ne, %1, %c0_i32_0 : i32
    scf.if %2 {
      %cst_9 = arith.constant 0.000000e+00 : f32
      %15 = vector.broadcast %cst_9 : f32 to vector<256x32xf32>
      %c0_10 = arith.constant 0 : index
      %c0_11 = arith.constant 0 : index
      %16 = vector.load %arg10[%c0_10, %c0_11] : memref<256x32xf32, #tpu.memory_space<vmem>>, vector<256x32xf32>
      tpu.vector_store %arg10[%c0_10, %c0_11], %15 {strides = array<i32>} : memref<256x32xf32, #tpu.memory_space<vmem>>, vector<256x32xf32>,
    } else {
    }
    %c256_i32 = arith.constant 256 : i32
    %3 = arith.muli %arg1, %c256_i32 : i32
    %4 = tpu.assume_multiple %3, 256 : i32
    %5 = arith.index_cast %4 : i32 to index
    %c0 = arith.constant 0 : index
    %6 = vector.load %arg3[%5, %c0] : memref<256x32xf32, #tpu.memory_space<vmem>>, vector<256x32xf32>
    %c0_1 = arith.constant 0 : index
    %c0_2 = arith.constant 0 : index
    %7 = vector.load %arg10[%c0_1, %c0_2] : memref<256x32xf32, #tpu.memory_space<vmem>>, vector<256x32xf32>
    %c0_3 = arith.constant 0 : index
    %c0_4 = arith.constant 0 : index
    %8 = vector.load %arg2[%c0_3, %c0_4] : memref<256x256xf32, #tpu.memory_space<vmem>>, vector<256x256xf32>
    %cst = arith.constant dense<0.000000e+00> : vector<256x32xf32>
    %9 = tpu.matmul %8, %6, %cst {dimension_numbers = #tpu.dot_dimension_numbers<[1], [0], [0], [1], [0, 0, 1, 1], [], []>} : vector<256x256xf32>, vector<256x32xf32>, vector<256x32xf32> -> vector<256x32xf32>
    %10 = arith.addf %7, %9 : vector<256x32xf32>
    %c0_5 = arith.constant 0 : index
    %c0_6 = arith.constant 0 : index
    %11 = vector.load %arg10[%c0_5, %c0_6] : memref<256x32xf32, #tpu.memory_space<vmem>>, vector<256x32xf32>
    tpu.vector_store %arg10[%c0_5, %c0_6], %10 {strides = array<i32>} : memref<256x32xf32, #tpu.memory_space<vmem>>, vector<256x32xf32>,
    %c0_i32_7 = arith.constant 0 : i32
    %12 = arith.cmpi eq, %arg1, %c0_i32_7 : i32
    %13 = arith.extui %12 : i1 to i32
    %c0_i32_8 = arith.constant 0 : i32
    %14 = arith.cmpi ne, %13, %c0_i32_8 : i32
    scf.if %14 {
      %c0_9 = arith.constant 0 : index
      %c0_10 = arith.constant 0 : index
      %15 = vector.load %arg4[%c0_9, %c0_10] : memref<256x32xf32, #tpu.memory_space<vmem>>, vector<256x32xf32>
      %c0_11 = arith.constant 0 : index
      %c0_12 = arith.constant 0 : index
      %16 = vector.load %arg10[%c0_11, %c0_12] : memref<256x32xf32, #tpu.memory_space<vmem>>, vector<256x32xf32>
      %17 = arith.addf %15, %16 : vector<256x32xf32>
      %c0_13 = arith.constant 0 : index
      %c0_14 = arith.constant 0 : index
      %18 = vector.load %arg5[%c0_13, %c0_14] : memref<32x32xf32, #tpu.memory_space<vmem>>, vector<32x32xf32>
      %cst_15 = arith.constant dense<0.000000e+00> : vector<256x32xf32>
      %19 = tpu.matmul %17, %18, %cst_15 {dimension_numbers = #tpu.dot_dimension_numbers<[1], [0], [0], [1], [0, 0, 1, 1], [], []>} : vector<256x32xf32>, vector<32x32xf32>, vector<256x32xf32> -> vector<256x32xf32>
      %c0_16 = arith.constant 0 : index
      %c0_17 = arith.constant 0 : index
      %20 = vector.load %arg6[%c0_16, %c0_17] : memref<1x32xf32, #tpu.memory_space<vmem>>, vector<1x32xf32>
      %21 = vector.broadcast %20 : vector<1x32xf32> to vector<256x32xf32>
      %22 = arith.addf %19, %21 : vector<256x32xf32>
      %cst_18 = arith.constant 0.000000e+00 : f32
      %23 = vector.broadcast %cst_18 : f32 to vector<256x32xf32>
      %24 = arith.cmpf oge, %22, %23 : vector<256x32xf32>
      %cst_19 = arith.constant 0.00999999977 : f32
      %25 = vector.broadcast %cst_19 : f32 to vector<256x32xf32>
      %26 = arith.mulf %25, %22 : vector<256x32xf32>
      %27 = arith.select %24, %22, %26 : vector<256x32xi1>, vector<256x32xf32>
      %28 = arith.mulf %15, %16 : vector<256x32xf32>
      %c0_20 = arith.constant 0 : index
      %c0_21 = arith.constant 0 : index
      %29 = vector.load %arg7[%c0_20, %c0_21] : memref<32x32xf32, #tpu.memory_space<vmem>>, vector<32x32xf32>
      %cst_22 = arith.constant dense<0.000000e+00> : vector<256x32xf32>
      %30 = tpu.matmul %28, %29, %cst_22 {dimension_numbers = #tpu.dot_dimension_numbers<[1], [0], [0], [1], [0, 0, 1, 1], [], []>} : vector<256x32xf32>, vector<32x32xf32>, vector<256x32xf32> -> vector<256x32xf32>
      %c0_23 = arith.constant 0 : index
      %c0_24 = arith.constant 0 : index
      %31 = vector.load %arg8[%c0_23, %c0_24] : memref<1x32xf32, #tpu.memory_space<vmem>>, vector<1x32xf32>
      %32 = vector.broadcast %31 : vector<1x32xf32> to vector<256x32xf32>
      %33 = arith.addf %30, %32 : vector<256x32xf32>
      %cst_25 = arith.constant 0.000000e+00 : f32
      %34 = vector.broadcast %cst_25 : f32 to vector<256x32xf32>
      %35 = arith.cmpf oge, %33, %34 : vector<256x32xf32>
      %cst_26 = arith.constant 0.00999999977 : f32
      %36 = vector.broadcast %cst_26 : f32 to vector<256x32xf32>
      %37 = arith.mulf %36, %33 : vector<256x32xf32>
      %38 = arith.select %35, %33, %37 : vector<256x32xi1>, vector<256x32xf32>
      %39 = arith.addf %27, %38 : vector<256x32xf32>
      %c0_27 = arith.constant 0 : index
      %c0_28 = arith.constant 0 : index
      %40 = vector.load %arg9[%c0_27, %c0_28] : memref<256x32xf32, #tpu.memory_space<vmem>>, vector<256x32xf32>
      tpu.vector_store %arg9[%c0_27, %c0_28], %39 {strides = array<i32>} : memref<256x32xf32, #tpu.memory_space<vmem>>, vector<256x32xf32>,
    } else {
    }
    return
  }
  func.func @transform_0(%arg0: i32, %arg1: i32) -> (i32, i32) {
    %c0_i32 = arith.constant 0 : i32
    return %arg0, %arg1 : i32, i32
  }
  func.func @transform_1(%arg0: i32, %arg1: i32) -> (i32, i32) {
    %c0_i32 = arith.constant 0 : i32
    %c0_i32_0 = arith.constant 0 : i32
    %c0_i32_1 = arith.constant 0 : i32
    return %c0_i32, %c0_i32_0 : i32, i32
  }
  func.func @transform_2(%arg0: i32, %arg1: i32) -> (i32, i32) {
    %c0_i32 = arith.constant 0 : i32
    %c0_i32_0 = arith.constant 0 : i32
    return %arg0, %c0_i32 : i32, i32
  }
  func.func @transform_3(%arg0: i32, %arg1: i32) -> (i32, i32) {
    %c0_i32 = arith.constant 0 : i32
    %c0_i32_0 = arith.constant 0 : i32
    %c0_i32_1 = arith.constant 0 : i32
    return %c0_i32, %c0_i32_0 : i32, i32
  }
  func.func @transform_4(%arg0: i32, %arg1: i32) -> (i32, i32) {
    %c0_i32 = arith.constant 0 : i32
    %c0_i32_0 = arith.constant 0 : i32
    %c0_i32_1 = arith.constant 0 : i32
    return %c0_i32, %c0_i32_0 : i32, i32
  }
  func.func @transform_5(%arg0: i32, %arg1: i32) -> (i32, i32) {
    %c0_i32 = arith.constant 0 : i32
    %c0_i32_0 = arith.constant 0 : i32
    %c0_i32_1 = arith.constant 0 : i32
    return %c0_i32, %c0_i32_0 : i32, i32
  }
  func.func @transform_6(%arg0: i32, %arg1: i32) -> (i32, i32) {
    %c0_i32 = arith.constant 0 : i32
    %c0_i32_0 = arith.constant 0 : i32
    %c0_i32_1 = arith.constant 0 : i32
    return %c0_i32, %c0_i32_0 : i32, i32
  }
  func.func @transform_7(%arg0: i32, %arg1: i32) -> (i32, i32) {
    %c0_i32 = arith.constant 0 : i32
    %c0_i32_0 = arith.constant 0 : i32
    return %arg0, %c0_i32 : i32, i32
  }
}

</mosaic_0001>

<llo_original>
// kernel: bi_aggregator.1
$region0: #{bi_aggregator.1}
  #allocation0 [shape = 'u32[]', space=smem, size = 0x4, offset = 0x4, fixed_abs, tag = 'smem constant byte address 0x4 - core index']
  #allocation1 [shape = 'u32[144,128]{1,0:T(1,128)}', space=vmem, size = 0x12000, scoped, tag = 'internal scratch']
  #allocation2 [shape = 'f32[256,32]{1,0:T(8,128)}', space=vmem, size = 0x20000, scoped, tag = 'scratch operand']
  %s0 = inlined_call_operand.hbm [shape: f32[256,256], index: 0, kind: input, shape index: {}]
  %s1 = inlined_call_operand.vmem [shape: f32[256,32], index: 1, kind: input, shape index: {}, may-alias: {1,2}]
  %s2 = inlined_call_operand.vmem [shape: f32[256,32], index: 2, kind: input, shape index: {}, may-alias: {1,2}]
  %s3 = inlined_call_operand.vmem [shape: f32[32,32], index: 3, kind: input, shape index: {}]
  %s4 = inlined_call_operand.vmem [shape: f32[1,32], index: 4, kind: input, shape index: {}]
  %s5 = inlined_call_operand.vmem [shape: f32[32,32], index: 5, kind: input, shape index: {}]
  %s6 = inlined_call_operand.vmem [shape: f32[1,32], index: 6, kind: input, shape index: {}]
  %s7 = inlined_call_operand.vmem [shape: f32[256,32], index: 7, kind: output, shape index: {}]
  %s8 = sld [smem:[#allocation0]]
  $region50: #{bi_aggregator.1} parent=0
    _
  %s10 = ssub.s32 1, %s8
  %s11 = scalar_select 0, %s10, %s8
  $region1: #{bi_aggregator.1} parent=0
    #allocation3 [shape = 'u8[262144]{0}', space=vmem, size = 0x40000, scoped, tag = 'input window, operand 0, single buffered']
    #allocation4 [shape = 's32[1]{0}', space=sflag, size = 0x4, scoped, tag = 'scoped memory for bi_aggregator.1']
    %12 = vsyncpa [#allocation4], 0
    // Predicated region
    $region2: #{bi_aggregator.1} parent=1 // pred_check
      _
    $region3: #{bi_aggregator.1} parent=1 // pred_check_branch
      %14 = sbr.rel (0) target = $region5
    $region4: #{bi_aggregator.1} parent=1 // pred_region
      %s16 = ssub.s32 8192, 8192
      %17 = vsyncadd [#allocation4], %s16
      %s18 = sshll.u32 [#allocation3], 4
      %s19 = int_to_ptr.vmem [resolvable:$true] %s18
      %24 = dma.hbm_to_vmem [thread:$0]  %s0, 8192, %s19, [#allocation4], 256, 256, 16
    $region5: #{bi_aggregator.1} parent=1 // pred_fallthru
      _
    // Predicated region
    $region6: #{bi_aggregator.1} parent=1 // pred_check
      _
    $region7: #{bi_aggregator.1} parent=1 // pred_check_branch
      %26 = sbr.rel (0) target = $region9
    $region8: #{bi_aggregator.1} parent=1 // pred_region
      _
    $region9: #{bi_aggregator.1} parent=1 // pred_fallthru
      _
    // Predicated region
    $region10: #{bi_aggregator.1} parent=1 // pred_check
      _
    $region11: #{bi_aggregator.1} parent=1 // pred_check_branch
      %28 = sbr.rel (0) target = $region13
    $region12: #{bi_aggregator.1} parent=1 // pred_region
      _
    $region13: #{bi_aggregator.1} parent=1 // pred_fallthru
      _
    // Predicated region
    $region14: #{bi_aggregator.1} parent=1 // pred_check
      _
    $region15: #{bi_aggregator.1} parent=1 // pred_check_branch
      %30 = sbr.rel (0) target = $region17
    $region16: #{bi_aggregator.1} parent=1 // pred_region
      _
    $region17: #{bi_aggregator.1} parent=1 // pred_fallthru
      _
    // Predicated region
    $region18: #{bi_aggregator.1} parent=1 // pred_check
      _
    $region19: #{bi_aggregator.1} parent=1 // pred_check_branch
      %32 = sbr.rel (0) target = $region21
    $region20: #{bi_aggregator.1} parent=1 // pred_region
      _
    $region21: #{bi_aggregator.1} parent=1 // pred_fallthru
      _
    // Predicated region
    $region22: #{bi_aggregator.1} parent=1 // pred_check
      _
    $region23: #{bi_aggregator.1} parent=1 // pred_check_branch
      %34 = sbr.rel (0) target = $region25
    $region24: #{bi_aggregator.1} parent=1 // pred_region
      _
    $region25: #{bi_aggregator.1} parent=1 // pred_fallthru
      _
    // Predicated region
    $region26: #{bi_aggregator.1} parent=1 // pred_check
      _
    $region27: #{bi_aggregator.1} parent=1 // pred_check_branch
      %36 = sbr.rel (0) target = $region29
    $region28: #{bi_aggregator.1} parent=1 // pred_region
      _
    $region29: #{bi_aggregator.1} parent=1 // pred_fallthru
      _
    // Predicated region
    $region30: #{bi_aggregator.1} parent=1 // pred_check
      _
    $region31: #{bi_aggregator.1} parent=1 // pred_check_branch
      %38 = sbr.rel (0) target = $region33
    $region32: #{bi_aggregator.1} parent=1 // pred_region
      %39 = dma.done [#allocation4], 8192
    $region33: #{bi_aggregator.1} parent=1 // pred_fallthru
      _
    %p40 = scmp.eq.s32.totalorder 0, 0
    // Predicated region
    $region34: #{bi_aggregator.1} parent=1 // pred_check
      %p41 = pneg %p40
    $region35: #{bi_aggregator.1} parent=1 // pred_check_branch
      %43 = sbr.rel (%p41) target = $region37
    $region36: #{bi_aggregator.1} parent=1 // pred_region
      %vm44 = vcmask 261120
      %45 = vst.msk [vmem:[#allocation2] sm:$0xff] %vm44, 0.0
      %46 = vst.msk [vmem:[#allocation2 + $0x8] sm:$0xff] %vm44, 0.0
      %47 = vst.msk [vmem:[#allocation2 + $0x10] sm:$0xff] %vm44, 0.0
      %48 = vst.msk [vmem:[#allocation2 + $0x18] sm:$0xff] %vm44, 0.0
      %49 = vst.msk [vmem:[#allocation2 + $0x20] sm:$0xff] %vm44, 0.0
      %50 = vst.msk [vmem:[#allocation2 + $0x28] sm:$0xff] %vm44, 0.0
      %51 = vst.msk [vmem:[#allocation2 + $0x30] sm:$0xff] %vm44, 0.0
      %52 = vst.msk [vmem:[#allocation2 + $0x38] sm:$0xff] %vm44, 0.0
      %53 = vst.msk [vmem:[#allocation2 + $0x40] sm:$0xff] %vm44, 0.0
      %54 = vst.msk [vmem:[#allocation2 + $0x48] sm:$0xff] %vm44, 0.0
      %55 = vst.msk [vmem:[#allocation2 + $0x50] sm:$0xff] %vm44, 0.0
      %56 = vst.msk [vmem:[#allocation2 + $0x58] sm:$0xff] %vm44, 0.0
      %57 = vst.msk [vmem:[#allocation2 + $0x60] sm:$0xff] %vm44, 0.0
      %58 = vst.msk [vmem:[#allocation2 + $0x68] sm:$0xff] %vm44, 0.0
      %59 = vst.msk [vmem:[#allocation2 + $0x70] sm:$0xff] %vm44, 0.0
      %60 = vst.msk [vmem:[#allocation2 + $0x78] sm:$0xff] %vm44, 0.0
      %61 = vst.msk [vmem:[#allocation2 + $0x80] sm:$0xff] %vm44, 0.0
      %62 = vst.msk [vmem:[#allocation2 + $0x88] sm:$0xff] %vm44, 0.0
      %63 = vst.msk [vmem:[#allocation2 + $0x90] sm:$0xff] %vm44, 0.0
      %64 = vst.msk [vmem:[#allocation2 + $0x98] sm:$0xff] %vm44, 0.0
      %65 = vst.msk [vmem:[#allocation2 + $0xa0] sm:$0xff] %vm44, 0.0
      %66 = vst.msk [vmem:[#allocation2 + $0xa8] sm:$0xff] %vm44, 0.0
      %67 = vst.msk [vmem:[#allocation2 + $0xb0] sm:$0xff] %vm44, 0.0
      %68 = vst.msk [vmem:[#allocation2 + $0xb8] sm:$0xff] %vm44, 0.0
      %69 = vst.msk [vmem:[#allocation2 + $0xc0] sm:$0xff] %vm44, 0.0
      %70 = vst.msk [vmem:[#allocation2 + $0xc8] sm:$0xff] %vm44, 0.0
      %71 = vst.msk [vmem:[#allocation2 + $0xd0] sm:$0xff] %vm44, 0.0
      %72 = vst.msk [vmem:[#allocation2 + $0xd8] sm:$0xff] %vm44, 0.0
      %73 = vst.msk [vmem:[#allocation2 + $0xe0] sm:$0xff] %vm44, 0.0
      %74 = vst.msk [vmem:[#allocation2 + $0xe8] sm:$0xff] %vm44, 0.0
      %75 = vst.msk [vmem:[#allocation2 + $0xf0] sm:$0xff] %vm44, 0.0
      %76 = vst.msk [vmem:[#allocation2 + $0xf8] sm:$0xff] %vm44, 0.0
    $region37: #{bi_aggregator.1} parent=1 // pred_fallthru
      _
    %s77 = smul.u32 0, 256
    %s78 = scalar_lea.vmem %s1, %s77
    %v79 = vld [vmem:[%s78] sm:$0xff]
    %v80 = vld [vmem:[%s78 + $0x8] sm:$0xff]
    %v81 = vld [vmem:[%s78 + $0x10] sm:$0xff]
    %v82 = vld [vmem:[%s78 + $0x18] sm:$0xff]
    %v83 = vld [vmem:[%s78 + $0x20] sm:$0xff]
    %v84 = vld [vmem:[%s78 + $0x28] sm:$0xff]
    %v85 = vld [vmem:[%s78 + $0x30] sm:$0xff]
    %v86 = vld [vmem:[%s78 + $0x38] sm:$0xff]
    %v87 = vld [vmem:[%s78 + $0x40] sm:$0xff]
    %v88 = vld [vmem:[%s78 + $0x48] sm:$0xff]
    %v89 = vld [vmem:[%s78 + $0x50] sm:$0xff]
    %v90 = vld [vmem:[%s78 + $0x58] sm:$0xff]
    %v91 = vld [vmem:[%s78 + $0x60] sm:$0xff]
    %v92 = vld [vmem:[%s78 + $0x68] sm:$0xff]
    %v93 = vld [vmem:[%s78 + $0x70] sm:$0xff]
    %v94 = vld [vmem:[%s78 + $0x78] sm:$0xff]
    %v95 = vld [vmem:[%s78 + $0x80] sm:$0xff]
    %v96 = vld [vmem:[%s78 + $0x88] sm:$0xff]
    %v97 = vld [vmem:[%s78 + $0x90] sm:$0xff]
    %v98 = vld [vmem:[%s78 + $0x98] sm:$0xff]
    %v99 = vld [vmem:[%s78 + $0xa0] sm:$0xff]
    %v100 = vld [vmem:[%s78 + $0xa8] sm:$0xff]
    %v101 = vld [vmem:[%s78 + $0xb0] sm:$0xff]
    %v102 = vld [vmem:[%s78 + $0xb8] sm:$0xff]
    %v103 = vld [vmem:[%s78 + $0xc0] sm:$0xff]
    %v104 = vld [vmem:[%s78 + $0xc8] sm:$0xff]
    %v105 = vld [vmem:[%s78 + $0xd0] sm:$0xff]
    %v106 = vld [vmem:[%s78 + $0xd8] sm:$0xff]
    %v107 = vld [vmem:[%s78 + $0xe0] sm:$0xff]
    %v108 = vld [vmem:[%s78 + $0xe8] sm:$0xff]
    %v109 = vld [vmem:[%s78 + $0xf0] sm:$0xff]
    %v110 = vld [vmem:[%s78 + $0xf8] sm:$0xff]
    %v111 = vld [vmem:[#allocation2] sm:$0xff]
    %v112 = vld [vmem:[#allocation2 + $0x8] sm:$0xff]
    %v113 = vld [vmem:[#allocation2 + $0x10] sm:$0xff]
    %v114 = vld [vmem:[#allocation2 + $0x18] sm:$0xff]
    %v115 = vld [vmem:[#allocation2 + $0x20] sm:$0xff]
    %v116 = vld [vmem:[#allocation2 + $0x28] sm:$0xff]
    %v117 = vld [vmem:[#allocation2 + $0x30] sm:$0xff]
    %v118 = vld [vmem:[#allocation2 + $0x38] sm:$0xff]
    %v119 = vld [vmem:[#allocation2 + $0x40] sm:$0xff]
    %v120 = vld [vmem:[#allocation2 + $0x48] sm:$0xff]
    %v121 = vld [vmem:[#allocation2 + $0x50] sm:$0xff]
    %v122 = vld [vmem:[#allocation2 + $0x58] sm:$0xff]
    %v123 = vld [vmem:[#allocation2 + $0x60] sm:$0xff]
    %v124 = vld [vmem:[#allocation2 + $0x68] sm:$0xff]
    %v125 = vld [vmem:[#allocation2 + $0x70] sm:$0xff]
    %v126 = vld [vmem:[#allocation2 + $0x78] sm:$0xff]
    %v127 = vld [vmem:[#allocation2 + $0x80] sm:$0xff]
    %v128 = vld [vmem:[#allocation2 + $0x88] sm:$0xff]
    %v129 = vld [vmem:[#allocation2 + $0x90] sm:$0xff]
    %v130 = vld [vmem:[#allocation2 + $0x98] sm:$0xff]
    %v131 = vld [vmem:[#allocation2 + $0xa0] sm:$0xff]
    %v132 = vld [vmem:[#allocation2 + $0xa8] sm:$0xff]
    %v133 = vld [vmem:[#allocation2 + $0xb0] sm:$0xff]
    %v134 = vld [vmem:[#allocation2 + $0xb8] sm:$0xff]
    %v135 = vld [vmem:[#allocation2 + $0xc0] sm:$0xff]
    %v136 = vld [vmem:[#allocation2 + $0xc8] sm:$0xff]
    %v137 = vld [vmem:[#allocation2 + $0xd0] sm:$0xff]
    %v138 = vld [vmem:[#allocation2 + $0xd8] sm:$0xff]
    %v139 = vld [vmem:[#allocation2 + $0xe0] sm:$0xff]
    %v140 = vld [vmem:[#allocation2 + $0xe8] sm:$0xff]
    %v141 = vld [vmem:[#allocation2 + $0xf0] sm:$0xff]
    %v142 = vld [vmem:[#allocation2 + $0xf8] sm:$0xff]
    %v143 = vld [vmem:[#allocation3] sm:$0xff]
    %v144 = vld [vmem:[#allocation3 + $0x8] sm:$0xff]
    %v145 = vld [vmem:[#allocation3 + $0x10] sm:$0xff]
    %v146 = vld [vmem:[#allocation3 + $0x18] sm:$0xff]
    %v147 = vld [vmem:[#allocation3 + $0x20] sm:$0xff]
    %v148 = vld [vmem:[#allocation3 + $0x28] sm:$0xff]
    %v149 = vld [vmem:[#allocation3 + $0x30] sm:$0xff]
    %v150 = vld [vmem:[#allocation3 + $0x38] sm:$0xff]
    %v151 = vld [vmem:[#allocation3 + $0x40] sm:$0xff]
    %v152 = vld [vmem:[#allocation3 + $0x48] sm:$0xff]
    %v153 = vld [vmem:[#allocation3 + $0x50] sm:$0xff]
    %v154 = vld [vmem:[#allocation3 + $0x58] sm:$0xff]
    %v155 = vld [vmem:[#allocation3 + $0x60] sm:$0xff]
    %v156 = vld [vmem:[#allocation3 + $0x68] sm:$0xff]
    %v157 = vld [vmem:[#allocation3 + $0x70] sm:$0xff]
    %v158 = vld [vmem:[#allocation3 + $0x78] sm:$0xff]
    %v159 = vld [vmem:[#allocation3 + $0x80] sm:$0xff]
    %v160 = vld [vmem:[#allocation3 + $0x88] sm:$0xff]
    %v161 = vld [vmem:[#allocation3 + $0x90] sm:$0xff]
    %v162 = vld [vmem:[#allocation3 + $0x98] sm:$0xff]
    %v163 = vld [vmem:[#allocation3 + $0xa0] sm:$0xff]
    %v164 = vld [vmem:[#allocation3 + $0xa8] sm:$0xff]
    %v165 = vld [vmem:[#allocation3 + $0xb0] sm:$0xff]
    %v166 = vld [vmem:[#allocation3 + $0xb8] sm:$0xff]
    %v167 = vld [vmem:[#allocation3 + $0xc0] sm:$0xff]
    %v168 = vld [vmem:[#allocation3 + $0xc8] sm:$0xff]
    %v169 = vld [vmem:[#allocation3 + $0xd0] sm:$0xff]
    %v170 = vld [vmem:[#allocation3 + $0xd8] sm:$0xff]
    %v171 = vld [vmem:[#allocation3 + $0xe0] sm:$0xff]
    %v172 = vld [vmem:[#allocation3 + $0xe8] sm:$0xff]
    %v173 = vld [vmem:[#allocation3 + $0xf0] sm:$0xff]
    %v174 = vld [vmem:[#allocation3 + $0xf8] sm:$0xff]
    %v175 = vld [vmem:[#allocation3 + $0x100] sm:$0xff]
    %v176 = vld [vmem:[#allocation3 + $0x108] sm:$0xff]
    %v177 = vld [vmem:[#allocation3 + $0x110] sm:$0xff]
    %v178 = vld [vmem:[#allocation3 + $0x118] sm:$0xff]
    %v179 = vld [vmem:[#allocation3 + $0x120] sm:$0xff]
    %v180 = vld [vmem:[#allocation3 + $0x128] sm:$0xff]
    %v181 = vld [vmem:[#allocation3 + $0x130] sm:$0xff]
    %v182 = vld [vmem:[#allocation3 + $0x138] sm:$0xff]
    %v183 = vld [vmem:[#allocation3 + $0x140] sm:$0xff]
    %v184 = vld [vmem:[#allocation3 + $0x148] sm:$0xff]
    %v185 = vld [vmem:[#allocation3 + $0x150] sm:$0xff]
    %v186 = vld [vmem:[#allocation3 + $0x158] sm:$0xff]
    %v187 = vld [vmem:[#allocation3 + $0x160] sm:$0xff]
    %v188 = vld [vmem:[#allocation3 + $0x168] sm:$0xff]
    %v189 = vld [vmem:[#allocation3 + $0x170] sm:$0xff]
    %v190 = vld [vmem:[#allocation3 + $0x178] sm:$0xff]
    %v191 = vld [vmem:[#allocation3 + $0x180] sm:$0xff]
    %v192 = vld [vmem:[#allocation3 + $0x188] sm:$0xff]
    %v193 = vld [vmem:[#allocation3 + $0x190] sm:$0xff]
    %v194 = vld [vmem:[#allocation3 + $0x198] sm:$0xff]
    %v195 = vld [vmem:[#allocation3 + $0x1a0] sm:$0xff]
    %v196 = vld [vmem:[#allocation3 + $0x1a8] sm:$0xff]
    %v197 = vld [vmem:[#allocation3 + $0x1b0] sm:$0xff]
    %v198 = vld [vmem:[#allocation3 + $0x1b8] sm:$0xff]
    %v199 = vld [vmem:[#allocation3 + $0x1c0] sm:$0xff]
    %v200 = vld [vmem:[#allocation3 + $0x1c8] sm:$0xff]
    %v201 = vld [vmem:[#allocation3 + $0x1d0] sm:$0xff]
    %v202 = vld [vmem:[#allocation3 + $0x1d8] sm:$0xff]
    %v203 = vld [vmem:[#allocation3 + $0x1e0] sm:$0xff]
    %v204 = vld [vmem:[#allocation3 + $0x1e8] sm:$0xff]
    %v205 = vld [vmem:[#allocation3 + $0x1f0] sm:$0xff]
    %v206 = vld [vmem:[#allocation3 + $0x1f8] sm:$0xff]
    %207 = vmatprep.subr.mxu0 0.0
    %208 = vmatpush1.msra.mxu0 %v79
    %209 = vmatprep.subr.mxu0 0.0
    %210 = vmatpush1.msra.mxu0 %v80
    %211 = vmatprep.subr.mxu0 0.0
    %212 = vmatpush1.msra.mxu0 %v81
    %213 = vmatprep.subr.mxu0 0.0
    %214 = vmatpush1.msra.mxu0 %v82
    %215 = vmatprep.subr.mxu0 0.0
    %216 = vmatpush1.msra.mxu0 %v83
    %217 = vmatprep.subr.mxu0 0.0
    %218 = vmatpush1.msra.mxu0 %v84
    %219 = vmatprep.subr.mxu0 0.0
    %220 = vmatpush1.msra.mxu0 %v85
    %221 = vmatprep.subr.mxu0 0.0
    %222 = vmatpush1.msra.mxu0 %v86
    %223 = vmatprep.subr.mxu0 0.0
    %224 = vmatpush1.msra.mxu0 %v87
    %225 = vmatprep.subr.mxu0 0.0
    %226 = vmatpush1.msra.mxu0 %v88
    %227 = vmatprep.subr.mxu0 0.0
    %228 = vmatpush1.msra.mxu0 %v89
    %229 = vmatprep.subr.mxu0 0.0
    %230 = vmatpush1.msra.mxu0 %v90
    %231 = vmatprep.subr.mxu0 0.0
    %232 = vmatpush1.msra.mxu0 %v91
    %233 = vmatprep.subr.mxu0 0.0
    %234 = vmatpush1.msra.mxu0 %v92
    %235 = vmatprep.subr.mxu0 0.0
    %236 = vmatpush1.msra.mxu0 %v93
    %237 = vmatprep.subr.mxu0 0.0
    %238 = vmatpush1.msra.mxu0 %v94
    %239 = vmatprep.subr.mxu0 0.0
    %240 = vmatpush1.msra.mxu0 %v95
    %241 = vmatprep.subr.mxu0 0.0
    %242 = vmatpush1.msra.mxu0 %v96
    %243 = vmatprep.subr.mxu0 0.0
    %244 = vmatpush1.msra.mxu0 %v97
    %245 = vmatprep.subr.mxu0 0.0
    %246 = vmatpush1.msra.mxu0 %v98
    %247 = vmatprep.subr.mxu0 0.0
    %248 = vmatpush1.msra.mxu0 %v99
    %249 = vmatprep.subr.mxu0 0.0
    %250 = vmatpush1.msra.mxu0 %v100
    %251 = vmatprep.subr.mxu0 0.0
    %252 = vmatpush1.msra.mxu0 %v101
    %253 = vmatprep.subr.mxu0 0.0
    %254 = vmatpush1.msra.mxu0 %v102
    %255 = vmatprep.subr.mxu0 0.0
    %256 = vmatpush1.msra.mxu0 %v103
    %257 = vmatprep.subr.mxu0 0.0
    %258 = vmatpush1.msra.mxu0 %v104
    %259 = vmatprep.subr.mxu0 0.0
    %260 = vmatpush1.msra.mxu0 %v105
    %261 = vmatprep.subr.mxu0 0.0
    %262 = vmatpush1.msra.mxu0 %v106
    %263 = vmatprep.subr.mxu0 0.0
    %264 = vmatpush1.msra.mxu0 %v107
    %265 = vmatprep.subr.mxu0 0.0
    %266 = vmatpush1.msra.mxu0 %v108
    %267 = vmatprep.subr.mxu0 0.0
    %268 = vmatpush1.msra.mxu0 %v109
    %269 = vmatprep.subr.mxu0 0.0
    %270 = vmatpush1.msra.mxu0 %v110
    %271 = vmatprep.mubr.f32.mxu0 %v144
    %272 = vmatmul.mubr.f32.gmra.mrb[0].mxu0 %v143
    %v273 = vpop.f32.mrb[0].mxu0
    %v274 = vadd.f32 0.0, %v273
    %v275 = vpop.f32.mrb[0].mxu0
    %276 = vmatprep.mubr.f32.mxu0 %v146
    %277 = vmatmul.mubr.f32.gmra.mrb[0].mxu0 %v145
    %v278 = vpop.f32.mrb[0].mxu0
    %v279 = vadd.f32 0.0, %v278
    %v280 = vpop.f32.mrb[0].mxu0
    %281 = vmatprep.mubr.f32.mxu0 %v148
    %282 = vmatmul.mubr.f32.gmra.mrb[0].mxu0 %v147
    %v283 = vpop.f32.mrb[0].mxu0
    %v284 = vadd.f32 0.0, %v283
    %v285 = vpop.f32.mrb[0].mxu0
    %286 = vmatprep.mubr.f32.mxu0 %v150
    %287 = vmatmul.mubr.f32.gmra.mrb[0].mxu0 %v149
    %v288 = vpop.f32.mrb[0].mxu0
    %v289 = vadd.f32 0.0, %v288
    %v290 = vpop.f32.mrb[0].mxu0
    %291 = vmatprep.mubr.f32.mxu0 %v152
    %292 = vmatmul.mubr.f32.gmra.mrb[0].mxu0 %v151
    %v293 = vpop.f32.mrb[0].mxu0
    %v294 = vadd.f32 0.0, %v293
    %v295 = vpop.f32.mrb[0].mxu0
    %296 = vmatprep.mubr.f32.mxu0 %v154
    %297 = vmatmul.mubr.f32.gmra.mrb[0].mxu0 %v153
    %v298 = vpop.f32.mrb[0].mxu0
    %v299 = vadd.f32 0.0, %v298
    %v300 = vpop.f32.mrb[0].mxu0
    %301 = vmatprep.mubr.f32.mxu0 %v156
    %302 = vmatmul.mubr.f32.gmra.mrb[0].mxu0 %v155
    %v303 = vpop.f32.mrb[0].mxu0
    %v304 = vadd.f32 0.0, %v303
    %v305 = vpop.f32.mrb[0].mxu0
    %306 = vmatprep.mubr.f32.mxu0 %v158
    %307 = vmatmul.mubr.f32.gmra.mrb[0].mxu0 %v157
    %v308 = vpop.f32.mrb[0].mxu0
    %v309 = vadd.f32 0.0, %v308
    %v310 = vpop.f32.mrb[0].mxu0
    %311 = vmatprep.mubr.f32.mxu0 %v160
    %312 = vmatmul.mubr.f32.gmra.mrb[0].mxu0 %v159
    %v313 = vpop.f32.mrb[0].mxu0
    %v314 = vadd.f32 0.0, %v313
    %v315 = vpop.f32.mrb[0].mxu0
    %316 = vmatprep.mubr.f32.mxu0 %v162
    %317 = vmatmul.mubr.f32.gmra.mrb[0].mxu0 %v161
    %v318 = vpop.f32.mrb[0].mxu0
    %v319 = vadd.f32 0.0, %v318
    %v320 = vpop.f32.mrb[0].mxu0
    %321 = vmatprep.mubr.f32.mxu0 %v164
    %322 = vmatmul.mubr.f32.gmra.mrb[0].mxu0 %v163
    %v323 = vpop.f32.mrb[0].mxu0
    %v324 = vadd.f32 0.0, %v323
    %v325 = vpop.f32.mrb[0].mxu0
    %326 = vmatprep.mubr.f32.mxu0 %v166
    %327 = vmatmul.mubr.f32.gmra.mrb[0].mxu0 %v165
    %v328 = vpop.f32.mrb[0].mxu0
    %v329 = vadd.f32 0.0, %v328
    %v330 = vpop.f32.mrb[0].mxu0
    %331 = vmatprep.mubr.f32.mxu0 %v168
    %332 = vmatmul.mubr.f32.gmra.mrb[0].mxu0 %v167
    %v333 = vpop.f32.mrb[0].mxu0
    %v334 = vadd.f32 0.0, %v333
    %v335 = vpop.f32.mrb[0].mxu0
    %336 = vmatprep.mubr.f32.mxu0 %v170
    %337 = vmatmul.mubr.f32.gmra.mrb[0].mxu0 %v169
    %v338 = vpop.f32.mrb[0].mxu0
    %v339 = vadd.f32 0.0, %v338
    %v340 = vpop.f32.mrb[0].mxu0
    %341 = vmatprep.mubr.f32.mxu0 %v172
    %342 = vmatmul.mubr.f32.gmra.mrb[0].mxu0 %v171
    %v343 = vpop.f32.mrb[0].mxu0
    %v344 = vadd.f32 0.0, %v343
    %v345 = vpop.f32.mrb[0].mxu0
    %346 = vmatprep.mubr.f32.mxu0 %v174
    %347 = vmatmul.mubr.f32.gmra.mrb[0].mxu0 %v173
    %v348 = vpop.f32.mrb[0].mxu0
    %v349 = vadd.f32 0.0, %v348
    %v350 = vpop.f32.mrb[0].mxu0
    %351 = vmatprep.mubr.f32.mxu0 %v176
    %352 = vmatmul.mubr.f32.gmra.mrb[0].mxu0 %v175
    %v353 = vpop.f32.mrb[0].mxu0
    %v354 = vadd.f32 0.0, %v353
    %v355 = vpop.f32.mrb[0].mxu0
    %356 = vmatprep.mubr.f32.mxu0 %v178
    %357 = vmatmul.mubr.f32.gmra.mrb[0].mxu0 %v177
    %v358 = vpop.f32.mrb[0].mxu0
    %v359 = vadd.f32 0.0, %v358
    %v360 = vpop.f32.mrb[0].mxu0
    %361 = vmatprep.mubr.f32.mxu0 %v180
    %362 = vmatmul.mubr.f32.gmra.mrb[0].mxu0 %v179
    %v363 = vpop.f32.mrb[0].mxu0
    %v364 = vadd.f32 0.0, %v363
    %v365 = vpop.f32.mrb[0].mxu0
    %366 = vmatprep.mubr.f32.mxu0 %v182
    %367 = vmatmul.mubr.f32.gmra.mrb[0].mxu0 %v181
    %v368 = vpop.f32.mrb[0].mxu0
    %v369 = vadd.f32 0.0, %v368
    %v370 = vpop.f32.mrb[0].mxu0
    %371 = vmatprep.mubr.f32.mxu0 %v184
    %372 = vmatmul.mubr.f32.gmra.mrb[0].mxu0 %v183
    %v373 = vpop.f32.mrb[0].mxu0
    %v374 = vadd.f32 0.0, %v373
    %v375 = vpop.f32.mrb[0].mxu0
    %376 = vmatprep.mubr.f32.mxu0 %v186
    %377 = vmatmul.mubr.f32.gmra.mrb[0].mxu0 %v185
    %v378 = vpop.f32.mrb[0].mxu0
    %v379 = vadd.f32 0.0, %v378
    %v380 = vpop.f32.mrb[0].mxu0
    %381 = vmatprep.mubr.f32.mxu0 %v188
    %382 = vmatmul.mubr.f32.gmra.mrb[0].mxu0 %v187
    %v383 = vpop.f32.mrb[0].mxu0
    %v384 = vadd.f32 0.0, %v383
    %v385 = vpop.f32.mrb[0].mxu0
    %386 = vmatprep.mubr.f32.mxu0 %v190
    %387 = vmatmul.mubr.f32.gmra.mrb[0].mxu0 %v189
    %v388 = vpop.f32.mrb[0].mxu0
    %v389 = vadd.f32 0.0, %v388
    %v390 = vpop.f32.mrb[0].mxu0
    %391 = vmatprep.mubr.f32.mxu0 %v192
    %392 = vmatmul.mubr.f32.gmra.mrb[0].mxu0 %v191
    %v393 = vpop.f32.mrb[0].mxu0
    %v394 = vadd.f32 0.0, %v393
    %v395 = vpop.f32.mrb[0].mxu0
    %396 = vmatprep.mubr.f32.mxu0 %v194
    %397 = vmatmul.mubr.f32.gmra.mrb[0].mxu0 %v193
    %v398 = vpop.f32.mrb[0].mxu0
    %v399 = vadd.f32 0.0, %v398
    %v400 = vpop.f32.mrb[0].mxu0
    %401 = vmatprep.mubr.f32.mxu0 %v196
    %402 = vmatmul.mubr.f32.gmra.mrb[0].mxu0 %v195
    %v403 = vpop.f32.mrb[0].mxu0
    %v404 = vadd.f32 0.0, %v403
    %v405 = vpop.f32.mrb[0].mxu0
    %406 = vmatprep.mubr.f32.mxu0 %v198
    %407 = vmatmul.mubr.f32.gmra.mrb[0].mxu0 %v197
    %v408 = vpop.f32.mrb[0].mxu0
    %v409 = vadd.f32 0.0, %v408
    %v410 = vpop.f32.mrb[0].mxu0
    %411 = vmatprep.mubr.f32.mxu0 %v200
    %412 = vmatmul.mubr.f32.gmra.mrb[0].mxu0 %v199
    %v413 = vpop.f32.mrb[0].mxu0
    %v414 = vadd.f32 0.0, %v413
    %v415 = vpop.f32.mrb[0].mxu0
    %416 = vmatprep.mubr.f32.mxu0 %v202
    %417 = vmatmul.mubr.f32.gmra.mrb[0].mxu0 %v201
    %v418 = vpop.f32.mrb[0].mxu0
    %v419 = vadd.f32 0.0, %v418
    %v420 = vpop.f32.mrb[0].mxu0
    %421 = vmatprep.mubr.f32.mxu0 %v204
    %422 = vmatmul.mubr.f32.gmra.mrb[0].mxu0 %v203
    %v423 = vpop.f32.mrb[0].mxu0
    %v424 = vadd.f32 0.0, %v423
    %v425 = vpop.f32.mrb[0].mxu0
    %426 = vmatprep.mubr.f32.mxu0 %v206
    %427 = vmatmul.mubr.f32.gmra.mrb[0].mxu0 %v205
    %v428 = vpop.f32.mrb[0].mxu0
    %v429 = vadd.f32 0.0, %v428
    %v430 = vpop.f32.mrb[0].mxu0
    %431 = vdwg.mxu0
    %v432 = vadd.f32 %v111, %v274
    %v433 = vadd.f32 %v112, %v279
    %v434 = vadd.f32 %v113, %v284
    %v435 = vadd.f32 %v114, %v289
    %v436 = vadd.f32 %v115, %v294
    %v437 = vadd.f32 %v116, %v299
    %v438 = vadd.f32 %v117, %v304
    %v439 = vadd.f32 %v118, %v309
    %v440 = vadd.f32 %v119, %v314
    %v441 = vadd.f32 %v120, %v319
    %v442 = vadd.f32 %v121, %v324
    %v443 = vadd.f32 %v122, %v329
    %v444 = vadd.f32 %v123, %v334
    %v445 = vadd.f32 %v124, %v339
    %v446 = vadd.f32 %v125, %v344
    %v447 = vadd.f32 %v126, %v349
    %v448 = vadd.f32 %v127, %v354
    %v449 = vadd.f32 %v128, %v359
    %v450 = vadd.f32 %v129, %v364
    %v451 = vadd.f32 %v130, %v369
    %v452 = vadd.f32 %v131, %v374
    %v453 = vadd.f32 %v132, %v379
    %v454 = vadd.f32 %v133, %v384
    %v455 = vadd.f32 %v134, %v389
    %v456 = vadd.f32 %v135, %v394
    %v457 = vadd.f32 %v136, %v399
    %v458 = vadd.f32 %v137, %v404
    %v459 = vadd.f32 %v138, %v409
    %v460 = vadd.f32 %v139, %v414
    %v461 = vadd.f32 %v140, %v419
    %v462 = vadd.f32 %v141, %v424
    %v463 = vadd.f32 %v142, %v429
    %vm464 = vcmask 261120
    %465 = vst.msk [vmem:[#allocation2] sm:$0xff] %vm464, %v432
    %466 = vst.msk [vmem:[#allocation2 + $0x8] sm:$0xff] %vm464, %v433
    %467 = vst.msk [vmem:[#allocation2 + $0x10] sm:$0xff] %vm464, %v434
    %468 = vst.msk [vmem:[#allocation2 + $0x18] sm:$0xff] %vm464, %v435
    %469 = vst.msk [vmem:[#allocation2 + $0x20] sm:$0xff] %vm464, %v436
    %470 = vst.msk [vmem:[#allocation2 + $0x28] sm:$0xff] %vm464, %v437
    %471 = vst.msk [vmem:[#allocation2 + $0x30] sm:$0xff] %vm464, %v438
    %472 = vst.msk [vmem:[#allocation2 + $0x38] sm:$0xff] %vm464, %v439
    %473 = vst.msk [vmem:[#allocation2 + $0x40] sm:$0xff] %vm464, %v440
    %474 = vst.msk [vmem:[#allocation2 + $0x48] sm:$0xff] %vm464, %v441
    %475 = vst.msk [vmem:[#allocation2 + $0x50] sm:$0xff] %vm464, %v442
    %476 = vst.msk [vmem:[#allocation2 + $0x58] sm:$0xff] %vm464, %v443
    %477 = vst.msk [vmem:[#allocation2 + $0x60] sm:$0xff] %vm464, %v444
    %478 = vst.msk [vmem:[#allocation2 + $0x68] sm:$0xff] %vm464, %v445
    %479 = vst.msk [vmem:[#allocation2 + $0x70] sm:$0xff] %vm464, %v446
    %480 = vst.msk [vmem:[#allocation2 + $0x78] sm:$0xff] %vm464, %v447
    %481 = vst.msk [vmem:[#allocation2 + $0x80] sm:$0xff] %vm464, %v448
    %482 = vst.msk [vmem:[#allocation2 + $0x88] sm:$0xff] %vm464, %v449
    %483 = vst.msk [vmem:[#allocation2 + $0x90] sm:$0xff] %vm464, %v450
    %484 = vst.msk [vmem:[#allocation2 + $0x98] sm:$0xff] %vm464, %v451
    %485 = vst.msk [vmem:[#allocation2 + $0xa0] sm:$0xff] %vm464, %v452
    %486 = vst.msk [vmem:[#allocation2 + $0xa8] sm:$0xff] %vm464, %v453
    %487 = vst.msk [vmem:[#allocation2 + $0xb0] sm:$0xff] %vm464, %v454
    %488 = vst.msk [vmem:[#allocation2 + $0xb8] sm:$0xff] %vm464, %v455
    %489 = vst.msk [vmem:[#allocation2 + $0xc0] sm:$0xff] %vm464, %v456
    %490 = vst.msk [vmem:[#allocation2 + $0xc8] sm:$0xff] %vm464, %v457
    %491 = vst.msk [vmem:[#allocation2 + $0xd0] sm:$0xff] %vm464, %v458
    %492 = vst.msk [vmem:[#allocation2 + $0xd8] sm:$0xff] %vm464, %v459
    %493 = vst.msk [vmem:[#allocation2 + $0xe0] sm:$0xff] %vm464, %v460
    %494 = vst.msk [vmem:[#allocation2 + $0xe8] sm:$0xff] %vm464, %v461
    %495 = vst.msk [vmem:[#allocation2 + $0xf0] sm:$0xff] %vm464, %v462
    %496 = vst.msk [vmem:[#allocation2 + $0xf8] sm:$0xff] %vm464, %v463
    // Predicated region
    $region38: #{bi_aggregator.1} parent=1 // pred_check
      %p497 = pneg %p40
    $region39: #{bi_aggregator.1} parent=1 // pred_check_branch
      %499 = sbr.rel (%p497) target = $region41
    $region40: #{bi_aggregator.1} parent=1 // pred_region
      %v500 = vld [vmem:[%s2] sm:$0xff]
      %v501 = vld [vmem:[%s2 + $0x8] sm:$0xff]
      %v502 = vld [vmem:[%s2 + $0x10] sm:$0xff]
      %v503 = vld [vmem:[%s2 + $0x18] sm:$0xff]
      %v504 = vld [vmem:[%s2 + $0x20] sm:$0xff]
      %v505 = vld [vmem:[%s2 + $0x28] sm:$0xff]
      %v506 = vld [vmem:[%s2 + $0x30] sm:$0xff]
      %v507 = vld [vmem:[%s2 + $0x38] sm:$0xff]
      %v508 = vld [vmem:[%s2 + $0x40] sm:$0xff]
      %v509 = vld [vmem:[%s2 + $0x48] sm:$0xff]
      %v510 = vld [vmem:[%s2 + $0x50] sm:$0xff]
      %v511 = vld [vmem:[%s2 + $0x58] sm:$0xff]
      %v512 = vld [vmem:[%s2 + $0x60] sm:$0xff]
      %v513 = vld [vmem:[%s2 + $0x68] sm:$0xff]
      %v514 = vld [vmem:[%s2 + $0x70] sm:$0xff]
      %v515 = vld [vmem:[%s2 + $0x78] sm:$0xff]
      %v516 = vld [vmem:[%s2 + $0x80] sm:$0xff]
      %v517 = vld [vmem:[%s2 + $0x88] sm:$0xff]
      %v518 = vld [vmem:[%s2 + $0x90] sm:$0xff]
      %v519 = vld [vmem:[%s2 + $0x98] sm:$0xff]
      %v520 = vld [vmem:[%s2 + $0xa0] sm:$0xff]
      %v521 = vld [vmem:[%s2 + $0xa8] sm:$0xff]
      %v522 = vld [vmem:[%s2 + $0xb0] sm:$0xff]
      %v523 = vld [vmem:[%s2 + $0xb8] sm:$0xff]
      %v524 = vld [vmem:[%s2 + $0xc0] sm:$0xff]
      %v525 = vld [vmem:[%s2 + $0xc8] sm:$0xff]
      %v526 = vld [vmem:[%s2 + $0xd0] sm:$0xff]
      %v527 = vld [vmem:[%s2 + $0xd8] sm:$0xff]
      %v528 = vld [vmem:[%s2 + $0xe0] sm:$0xff]
      %v529 = vld [vmem:[%s2 + $0xe8] sm:$0xff]
      %v530 = vld [vmem:[%s2 + $0xf0] sm:$0xff]
      %v531 = vld [vmem:[%s2 + $0xf8] sm:$0xff]
      %v532 = vld [vmem:[#allocation2] sm:$0xff]
      %v533 = vld [vmem:[#allocation2 + $0x8] sm:$0xff]
      %v534 = vld [vmem:[#allocation2 + $0x10] sm:$0xff]
      %v535 = vld [vmem:[#allocation2 + $0x18] sm:$0xff]
      %v536 = vld [vmem:[#allocation2 + $0x20] sm:$0xff]
      %v537 = vld [vmem:[#allocation2 + $0x28] sm:$0xff]
      %v538 = vld [vmem:[#allocation2 + $0x30] sm:$0xff]
      %v539 = vld [vmem:[#allocation2 + $0x38] sm:$0xff]
      %v540 = vld [vmem:[#allocation2 + $0x40] sm:$0xff]
      %v541 = vld [vmem:[#allocation2 + $0x48] sm:$0xff]
      %v542 = vld [vmem:[#allocation2 + $0x50] sm:$0xff]
      %v543 = vld [vmem:[#allocation2 + $0x58] sm:$0xff]
      %v544 = vld [vmem:[#allocation2 + $0x60] sm:$0xff]
      %v545 = vld [vmem:[#allocation2 + $0x68] sm:$0xff]
      %v546 = vld [vmem:[#allocation2 + $0x70] sm:$0xff]
      %v547 = vld [vmem:[#allocation2 + $0x78] sm:$0xff]
      %v548 = vld [vmem:[#allocation2 + $0x80] sm:$0xff]
      %v549 = vld [vmem:[#allocation2 + $0x88] sm:$0xff]
      %v550 = vld [vmem:[#allocation2 + $0x90] sm:$0xff]
      %v551 = vld [vmem:[#allocation2 + $0x98] sm:$0xff]
      %v552 = vld [vmem:[#allocation2 + $0xa0] sm:$0xff]
      %v553 = vld [vmem:[#allocation2 + $0xa8] sm:$0xff]
      %v554 = vld [vmem:[#allocation2 + $0xb0] sm:$0xff]
      %v555 = vld [vmem:[#allocation2 + $0xb8] sm:$0xff]
      %v556 = vld [vmem:[#allocation2 + $0xc0] sm:$0xff]
      %v557 = vld [vmem:[#allocation2 + $0xc8] sm:$0xff]
      %v558 = vld [vmem:[#allocation2 + $0xd0] sm:$0xff]
      %v559 = vld [vmem:[#allocation2 + $0xd8] sm:$0xff]
      %v560 = vld [vmem:[#allocation2 + $0xe0] sm:$0xff]
      %v561 = vld [vmem:[#allocation2 + $0xe8] sm:$0xff]
      %v562 = vld [vmem:[#allocation2 + $0xf0] sm:$0xff]
      %v563 = vld [vmem:[#allocation2 + $0xf8] sm:$0xff]
      %v564 = vadd.f32 %v500, %v532
      %v565 = vadd.f32 %v501, %v533
      %v566 = vadd.f32 %v502, %v534
      %v567 = vadd.f32 %v503, %v535
      %v568 = vadd.f32 %v504, %v536
      %v569 = vadd.f32 %v505, %v537
      %v570 = vadd.f32 %v506, %v538
      %v571 = vadd.f32 %v507, %v539
      %v572 = vadd.f32 %v508, %v540
      %v573 = vadd.f32 %v509, %v541
      %v574 = vadd.f32 %v510, %v542
      %v575 = vadd.f32 %v511, %v543
      %v576 = vadd.f32 %v512, %v544
      %v577 = vadd.f32 %v513, %v545
      %v578 = vadd.f32 %v514, %v546
      %v579 = vadd.f32 %v515, %v547
      %v580 = vadd.f32 %v516, %v548
      %v581 = vadd.f32 %v517, %v549
      %v582 = vadd.f32 %v518, %v550
      %v583 = vadd.f32 %v519, %v551
      %v584 = vadd.f32 %v520, %v552
      %v585 = vadd.f32 %v521, %v553
      %v586 = vadd.f32 %v522, %v554
      %v587 = vadd.f32 %v523, %v555
      %v588 = vadd.f32 %v524, %v556
      %v589 = vadd.f32 %v525, %v557
      %v590 = vadd.f32 %v526, %v558
      %v591 = vadd.f32 %v527, %v559
      %v592 = vadd.f32 %v528, %v560
      %v593 = vadd.f32 %v529, %v561
      %v594 = vadd.f32 %v530, %v562
      %v595 = vadd.f32 %v531, %v563
      %v596 = vld [vmem:[%s3] sm:$0xff]
      %v597 = vld [vmem:[%s3 + $0x8] sm:$0xff]
      %v598 = vld [vmem:[%s3 + $0x10] sm:$0xff]
      %v599 = vld [vmem:[%s3 + $0x18] sm:$0xff]
      %v600 = vld [vmem:[%s4] sm:$0x1]
      %v602 = vlaneseq
      %v603 = vshrl.u32 %v602, 7
      %v604 = vsub.s32 0, %v603
      %v605 = vrot.slane %v600, %v604
      %v608 = vsel %vm464, %v564, 0
      %v611 = vsel %vm464, %v565, 0
      %v614 = vsel %vm464, %v566, 0
      %v617 = vsel %vm464, %v567, 0
      %v620 = vsel %vm464, %v568, 0
      %v623 = vsel %vm464, %v569, 0
      %v626 = vsel %vm464, %v570, 0
      %v629 = vsel %vm464, %v571, 0
      %v632 = vsel %vm464, %v572, 0
      %v635 = vsel %vm464, %v573, 0
      %v638 = vsel %vm464, %v574, 0
      %v641 = vsel %vm464, %v575, 0
      %v644 = vsel %vm464, %v576, 0
      %v647 = vsel %vm464, %v577, 0
      %v650 = vsel %vm464, %v578, 0
      %v653 = vsel %vm464, %v579, 0
      %v656 = vsel %vm464, %v580, 0
      %v659 = vsel %vm464, %v581, 0
      %v662 = vsel %vm464, %v582, 0
      %v665 = vsel %vm464, %v583, 0
      %v668 = vsel %vm464, %v584, 0
      %v671 = vsel %vm464, %v585, 0
      %v674 = vsel %vm464, %v586, 0
      %v677 = vsel %vm464, %v587, 0
      %v680 = vsel %vm464, %v588, 0
      %v683 = vsel %vm464, %v589, 0
      %v686 = vsel %vm464, %v590, 0
      %v689 = vsel %vm464, %v591, 0
      %v692 = vsel %vm464, %v592, 0
      %v695 = vsel %vm464, %v593, 0
      %v698 = vsel %vm464, %v594, 0
      %v701 = vsel %vm464, %v595, 0
      %703 = vmatprep.subr.mxu0 0.0
      %704 = vmatpush1.msra.mxu0 %v596
      %705 = vmatprep.subr.mxu0 0.0
      %706 = vmatpush1.msra.mxu0 %v597
      %707 = vmatprep.subr.mxu0 0.0
      %708 = vmatpush1.msra.mxu0 %v598
      %709 = vmatprep.subr.mxu0 0.0
      %710 = vmatpush1.msra.mxu0 %v599
      %711 = vmatprep.subr.mxu0 0.0
      %712 = vmatpush1.msra.mxu0 0.0
      %713 = vmatprep.subr.mxu0 0.0
      %714 = vmatpush1.msra.mxu0 0.0
      %715 = vmatprep.subr.mxu0 0.0
      %716 = vmatpush1.msra.mxu0 0.0
      %717 = vmatprep.subr.mxu0 0.0
      %718 = vmatpush1.msra.mxu0 0.0
      %719 = vmatprep.subr.mxu0 0.0
      %720 = vmatpush1.msra.mxu0 0.0
      %721 = vmatprep.subr.mxu0 0.0
      %722 = vmatpush1.msra.mxu0 0.0
      %723 = vmatprep.subr.mxu0 0.0
      %724 = vmatpush1.msra.mxu0 0.0
      %725 = vmatprep.subr.mxu0 0.0
      %726 = vmatpush1.msra.mxu0 0.0
      %727 = vmatprep.subr.mxu0 0.0
      %728 = vmatpush1.msra.mxu0 0.0
      %729 = vmatprep.subr.mxu0 0.0
      %730 = vmatpush1.msra.mxu0 0.0
      %731 = vmatprep.subr.mxu0 0.0
      %732 = vmatpush1.msra.mxu0 0.0
      %733 = vmatprep.subr.mxu0 0.0
      %734 = vmatpush1.msra.mxu0 0.0
      %735 = vmatprep.subr.mxu0 0.0
      %736 = vmatpush1.msra.mxu0 0.0
      %737 = vmatprep.subr.mxu0 0.0
      %738 = vmatpush1.msra.mxu0 0.0
      %739 = vmatprep.subr.mxu0 0.0
      %740 = vmatpush1.msra.mxu0 0.0
      %741 = vmatprep.subr.mxu0 0.0
      %742 = vmatpush1.msra.mxu0 0.0
      %743 = vmatprep.subr.mxu0 0.0
      %744 = vmatpush1.msra.mxu0 0.0
      %745 = vmatprep.subr.mxu0 0.0
      %746 = vmatpush1.msra.mxu0 0.0
      %747 = vmatprep.subr.mxu0 0.0
      %748 = vmatpush1.msra.mxu0 0.0
      %749 = vmatprep.subr.mxu0 0.0
      %750 = vmatpush1.msra.mxu0 0.0
      %751 = vmatprep.subr.mxu0 0.0
      %752 = vmatpush1.msra.mxu0 0.0
      %753 = vmatprep.subr.mxu0 0.0
      %754 = vmatpush1.msra.mxu0 0.0
      %755 = vmatprep.subr.mxu0 0.0
      %756 = vmatpush1.msra.mxu0 0.0
      %757 = vmatprep.subr.mxu0 0.0
      %758 = vmatpush1.msra.mxu0 0.0
      %759 = vmatprep.subr.mxu0 0.0
      %760 = vmatpush1.msra.mxu0 0.0
      %761 = vmatprep.subr.mxu0 0.0
      %762 = vmatpush1.msra.mxu0 0.0
      %763 = vmatprep.subr.mxu0 0.0
      %764 = vmatpush1.msra.mxu0 0.0
      %765 = vmatprep.subr.mxu0 0.0
      %766 = vmatpush1.msra.mxu0 0.0
      %767 = vmatprep.mubr.f32.mxu0 0.0
      %768 = vmatmul.mubr.f32.gmra.mrb[0].mxu0 %v608
      %v769 = vpop.f32.mrb[0].mxu0
      %v770 = vadd.f32 %v605, %v769
      %v771 = vpop.f32.mrb[0].mxu0
      %772 = vmatprep.mubr.f32.mxu0 0.0
      %773 = vmatmul.mubr.f32.gmra.mrb[0].mxu0 %v611
      %v774 = vpop.f32.mrb[0].mxu0
      %v775 = vadd.f32 %v605, %v774
      %v776 = vpop.f32.mrb[0].mxu0
      %777 = vmatprep.mubr.f32.mxu0 0.0
      %778 = vmatmul.mubr.f32.gmra.mrb[0].mxu0 %v614
      %v779 = vpop.f32.mrb[0].mxu0
      %v780 = vadd.f32 %v605, %v779
      %v781 = vpop.f32.mrb[0].mxu0
      %782 = vmatprep.mubr.f32.mxu0 0.0
      %783 = vmatmul.mubr.f32.gmra.mrb[0].mxu0 %v617
      %v784 = vpop.f32.mrb[0].mxu0
      %v785 = vadd.f32 %v605, %v784
      %v786 = vpop.f32.mrb[0].mxu0
      %787 = vmatprep.mubr.f32.mxu0 0.0
      %788 = vmatmul.mubr.f32.gmra.mrb[0].mxu0 %v620
      %v789 = vpop.f32.mrb[0].mxu0
      %v790 = vadd.f32 %v605, %v789
      %v791 = vpop.f32.mrb[0].mxu0
      %792 = vmatprep.mubr.f32.mxu0 0.0
      %793 = vmatmul.mubr.f32.gmra.mrb[0].mxu0 %v623
      %v794 = vpop.f32.mrb[0].mxu0
      %v795 = vadd.f32 %v605, %v794
      %v796 = vpop.f32.mrb[0].mxu0
      %797 = vmatprep.mubr.f32.mxu0 0.0
      %798 = vmatmul.mubr.f32.gmra.mrb[0].mxu0 %v626
      %v799 = vpop.f32.mrb[0].mxu0
      %v800 = vadd.f32 %v605, %v799
      %v801 = vpop.f32.mrb[0].mxu0
      %802 = vmatprep.mubr.f32.mxu0 0.0
      %803 = vmatmul.mubr.f32.gmra.mrb[0].mxu0 %v629
      %v804 = vpop.f32.mrb[0].mxu0
      %v805 = vadd.f32 %v605, %v804
      %v806 = vpop.f32.mrb[0].mxu0
      %807 = vmatprep.mubr.f32.mxu0 0.0
      %808 = vmatmul.mubr.f32.gmra.mrb[0].mxu0 %v632
      %v809 = vpop.f32.mrb[0].mxu0
      %v810 = vadd.f32 %v605, %v809
      %v811 = vpop.f32.mrb[0].mxu0
      %812 = vmatprep.mubr.f32.mxu0 0.0
      %813 = vmatmul.mubr.f32.gmra.mrb[0].mxu0 %v635
      %v814 = vpop.f32.mrb[0].mxu0
      %v815 = vadd.f32 %v605, %v814
      %v816 = vpop.f32.mrb[0].mxu0
      %817 = vmatprep.mubr.f32.mxu0 0.0
      %818 = vmatmul.mubr.f32.gmra.mrb[0].mxu0 %v638
      %v819 = vpop.f32.mrb[0].mxu0
      %v820 = vadd.f32 %v605, %v819
      %v821 = vpop.f32.mrb[0].mxu0
      %822 = vmatprep.mubr.f32.mxu0 0.0
      %823 = vmatmul.mubr.f32.gmra.mrb[0].mxu0 %v641
      %v824 = vpop.f32.mrb[0].mxu0
      %v825 = vadd.f32 %v605, %v824
      %v826 = vpop.f32.mrb[0].mxu0
      %827 = vmatprep.mubr.f32.mxu0 0.0
      %828 = vmatmul.mubr.f32.gmra.mrb[0].mxu0 %v644
      %v829 = vpop.f32.mrb[0].mxu0
      %v830 = vadd.f32 %v605, %v829
      %v831 = vpop.f32.mrb[0].mxu0
      %832 = vmatprep.mubr.f32.mxu0 0.0
      %833 = vmatmul.mubr.f32.gmra.mrb[0].mxu0 %v647
      %v834 = vpop.f32.mrb[0].mxu0
      %v835 = vadd.f32 %v605, %v834
      %v836 = vpop.f32.mrb[0].mxu0
      %837 = vmatprep.mubr.f32.mxu0 0.0
      %838 = vmatmul.mubr.f32.gmra.mrb[0].mxu0 %v650
      %v839 = vpop.f32.mrb[0].mxu0
      %v840 = vadd.f32 %v605, %v839
      %v841 = vpop.f32.mrb[0].mxu0
      %842 = vmatprep.mubr.f32.mxu0 0.0
      %843 = vmatmul.mubr.f32.gmra.mrb[0].mxu0 %v653
      %v844 = vpop.f32.mrb[0].mxu0
      %v845 = vadd.f32 %v605, %v844
      %v846 = vpop.f32.mrb[0].mxu0
      %847 = vmatprep.mubr.f32.mxu0 0.0
      %848 = vmatmul.mubr.f32.gmra.mrb[0].mxu0 %v656
      %v849 = vpop.f32.mrb[0].mxu0
      %v850 = vadd.f32 %v605, %v849
      %v851 = vpop.f32.mrb[0].mxu0
      %852 = vmatprep.mubr.f32.mxu0 0.0
      %853 = vmatmul.mubr.f32.gmra.mrb[0].mxu0 %v659
      %v854 = vpop.f32.mrb[0].mxu0
      %v855 = vadd.f32 %v605, %v854
      %v856 = vpop.f32.mrb[0].mxu0
      %857 = vmatprep.mubr.f32.mxu0 0.0
      %858 = vmatmul.mubr.f32.gmra.mrb[0].mxu0 %v662
      %v859 = vpop.f32.mrb[0].mxu0
      %v860 = vadd.f32 %v605, %v859
      %v861 = vpop.f32.mrb[0].mxu0
      %862 = vmatprep.mubr.f32.mxu0 0.0
      %863 = vmatmul.mubr.f32.gmra.mrb[0].mxu0 %v665
      %v864 = vpop.f32.mrb[0].mxu0
      %v865 = vadd.f32 %v605, %v864
      %v866 = vpop.f32.mrb[0].mxu0
      %867 = vmatprep.mubr.f32.mxu0 0.0
      %868 = vmatmul.mubr.f32.gmra.mrb[0].mxu0 %v668
      %v869 = vpop.f32.mrb[0].mxu0
      %v870 = vadd.f32 %v605, %v869
      %v871 = vpop.f32.mrb[0].mxu0
      %872 = vmatprep.mubr.f32.mxu0 0.0
      %873 = vmatmul.mubr.f32.gmra.mrb[0].mxu0 %v671
      %v874 = vpop.f32.mrb[0].mxu0
      %v875 = vadd.f32 %v605, %v874
      %v876 = vpop.f32.mrb[0].mxu0
      %877 = vmatprep.mubr.f32.mxu0 0.0
      %878 = vmatmul.mubr.f32.gmra.mrb[0].mxu0 %v674
      %v879 = vpop.f32.mrb[0].mxu0
      %v880 = vadd.f32 %v605, %v879
      %v881 = vpop.f32.mrb[0].mxu0
      %882 = vmatprep.mubr.f32.mxu0 0.0
      %883 = vmatmul.mubr.f32.gmra.mrb[0].mxu0 %v677
      %v884 = vpop.f32.mrb[0].mxu0
      %v885 = vadd.f32 %v605, %v884
      %v886 = vpop.f32.mrb[0].mxu0
      %887 = vmatprep.mubr.f32.mxu0 0.0
      %888 = vmatmul.mubr.f32.gmra.mrb[0].mxu0 %v680
      %v889 = vpop.f32.mrb[0].mxu0
      %v890 = vadd.f32 %v605, %v889
      %v891 = vpop.f32.mrb[0].mxu0
      %892 = vmatprep.mubr.f32.mxu0 0.0
      %893 = vmatmul.mubr.f32.gmra.mrb[0].mxu0 %v683
      %v894 = vpop.f32.mrb[0].mxu0
      %v895 = vadd.f32 %v605, %v894
      %v896 = vpop.f32.mrb[0].mxu0
      %897 = vmatprep.mubr.f32.mxu0 0.0
      %898 = vmatmul.mubr.f32.gmra.mrb[0].mxu0 %v686
      %v899 = vpop.f32.mrb[0].mxu0
      %v900 = vadd.f32 %v605, %v899
      %v901 = vpop.f32.mrb[0].mxu0
      %902 = vmatprep.mubr.f32.mxu0 0.0
      %903 = vmatmul.mubr.f32.gmra.mrb[0].mxu0 %v689
      %v904 = vpop.f32.mrb[0].mxu0
      %v905 = vadd.f32 %v605, %v904
      %v906 = vpop.f32.mrb[0].mxu0
      %907 = vmatprep.mubr.f32.mxu0 0.0
      %908 = vmatmul.mubr.f32.gmra.mrb[0].mxu0 %v692
      %v909 = vpop.f32.mrb[0].mxu0
      %v910 = vadd.f32 %v605, %v909
      %v911 = vpop.f32.mrb[0].mxu0
      %912 = vmatprep.mubr.f32.mxu0 0.0
      %913 = vmatmul.mubr.f32.gmra.mrb[0].mxu0 %v695
      %v914 = vpop.f32.mrb[0].mxu0
      %v915 = vadd.f32 %v605, %v914
      %v916 = vpop.f32.mrb[0].mxu0
      %917 = vmatprep.mubr.f32.mxu0 0.0
      %918 = vmatmul.mubr.f32.gmra.mrb[0].mxu0 %v698
      %v919 = vpop.f32.mrb[0].mxu0
      %v920 = vadd.f32 %v605, %v919
      %v921 = vpop.f32.mrb[0].mxu0
      %922 = vmatprep.mubr.f32.mxu0 0.0
      %923 = vmatmul.mubr.f32.gmra.mrb[0].mxu0 %v701
      %v924 = vpop.f32.mrb[0].mxu0
      %v925 = vadd.f32 %v605, %v924
      %v926 = vpop.f32.mrb[0].mxu0
      %927 = vdwg.mxu0
      %vm928 = vcmp.ge.f32.partialorder %v770, 0.0
      %vm929 = vcmp.ge.f32.partialorder %v775, 0.0
      %vm930 = vcmp.ge.f32.partialorder %v780, 0.0
      %vm931 = vcmp.ge.f32.partialorder %v785, 0.0
      %vm932 = vcmp.ge.f32.partialorder %v790, 0.0
      %vm933 = vcmp.ge.f32.partialorder %v795, 0.0
      %vm934 = vcmp.ge.f32.partialorder %v800, 0.0
      %vm935 = vcmp.ge.f32.partialorder %v805, 0.0
      %vm936 = vcmp.ge.f32.partialorder %v810, 0.0
      %vm937 = vcmp.ge.f32.partialorder %v815, 0.0
      %vm938 = vcmp.ge.f32.partialorder %v820, 0.0
      %vm939 = vcmp.ge.f32.partialorder %v825, 0.0
      %vm940 = vcmp.ge.f32.partialorder %v830, 0.0
      %vm941 = vcmp.ge.f32.partialorder %v835, 0.0
      %vm942 = vcmp.ge.f32.partialorder %v840, 0.0
      %vm943 = vcmp.ge.f32.partialorder %v845, 0.0
      %vm944 = vcmp.ge.f32.partialorder %v850, 0.0
      %vm945 = vcmp.ge.f32.partialorder %v855, 0.0
      %vm946 = vcmp.ge.f32.partialorder %v860, 0.0
      %vm947 = vcmp.ge.f32.partialorder %v865, 0.0
      %vm948 = vcmp.ge.f32.partialorder %v870, 0.0
      %vm949 = vcmp.ge.f32.partialorder %v875, 0.0
      %vm950 = vcmp.ge.f32.partialorder %v880, 0.0
      %vm951 = vcmp.ge.f32.partialorder %v885, 0.0
      %vm952 = vcmp.ge.f32.partialorder %v890, 0.0
      %vm953 = vcmp.ge.f32.partialorder %v895, 0.0
      %vm954 = vcmp.ge.f32.partialorder %v900, 0.0
      %vm955 = vcmp.ge.f32.partialorder %v905, 0.0
      %vm956 = vcmp.ge.f32.partialorder %v910, 0.0
      %vm957 = vcmp.ge.f32.partialorder %v915, 0.0
      %vm958 = vcmp.ge.f32.partialorder %v920, 0.0
      %vm959 = vcmp.ge.f32.partialorder %v925, 0.0
      %v960 = vmul.f32 %v770, 0.01
      %v961 = vmul.f32 %v775, 0.01
      %v962 = vmul.f32 %v780, 0.01
      %v963 = vmul.f32 %v785, 0.01
      %v964 = vmul.f32 %v790, 0.01
      %v965 = vmul.f32 %v795, 0.01
      %v966 = vmul.f32 %v800, 0.01
      %v967 = vmul.f32 %v805, 0.01
      %v968 = vmul.f32 %v810, 0.01
      %v969 = vmul.f32 %v815, 0.01
      %v970 = vmul.f32 %v820, 0.01
      %v971 = vmul.f32 %v825, 0.01
      %v972 = vmul.f32 %v830, 0.01
      %v973 = vmul.f32 %v835, 0.01
      %v974 = vmul.f32 %v840, 0.01
      %v975 = vmul.f32 %v845, 0.01
      %v976 = vmul.f32 %v850, 0.01
      %v977 = vmul.f32 %v855, 0.01
      %v978 = vmul.f32 %v860, 0.01
      %v979 = vmul.f32 %v865, 0.01
      %v980 = vmul.f32 %v870, 0.01
      %v981 = vmul.f32 %v875, 0.01
      %v982 = vmul.f32 %v880, 0.01
      %v983 = vmul.f32 %v885, 0.01
      %v984 = vmul.f32 %v890, 0.01
      %v985 = vmul.f32 %v895, 0.01
      %v986 = vmul.f32 %v900, 0.01
      %v987 = vmul.f32 %v905, 0.01
      %v988 = vmul.f32 %v910, 0.01
      %v989 = vmul.f32 %v915, 0.01
      %v990 = vmul.f32 %v920, 0.01
      %v991 = vmul.f32 %v925, 0.01
      %v992 = vsel %vm928, %v770, %v960
      %v993 = vsel %vm929, %v775, %v961
      %v994 = vsel %vm930, %v780, %v962
      %v995 = vsel %vm931, %v785, %v963
      %v996 = vsel %vm932, %v790, %v964
      %v997 = vsel %vm933, %v795, %v965
      %v998 = vsel %vm934, %v800, %v966
      %v999 = vsel %vm935, %v805, %v967
      %v1000 = vsel %vm936, %v810, %v968
      %v1001 = vsel %vm937, %v815, %v969
      %v1002 = vsel %vm938, %v820, %v970
      %v1003 = vsel %vm939, %v825, %v971
      %v1004 = vsel %vm940, %v830, %v972
      %v1005 = vsel %vm941, %v835, %v973
      %v1006 = vsel %vm942, %v840, %v974
      %v1007 = vsel %vm943, %v845, %v975
      %v1008 = vsel %vm944, %v850, %v976
      %v1009 = vsel %vm945, %v855, %v977
      %v1010 = vsel %vm946, %v860, %v978
      %v1011 = vsel %vm947, %v865, %v979
      %v1012 = vsel %vm948, %v870, %v980
      %v1013 = vsel %vm949, %v875, %v981
      %v1014 = vsel %vm950, %v880, %v982
      %v1015 = vsel %vm951, %v885, %v983
      %v1016 = vsel %vm952, %v890, %v984
      %v1017 = vsel %vm953, %v895, %v985
      %v1018 = vsel %vm954, %v900, %v986
      %v1019 = vsel %vm955, %v905, %v987
      %v1020 = vsel %vm956, %v910, %v988
      %v1021 = vsel %vm957, %v915, %v989
      %v1022 = vsel %vm958, %v920, %v990
      %v1023 = vsel %vm959, %v925, %v991
      %v1024 = vmul.f32 %v500, %v532
      %v1025 = vmul.f32 %v501, %v533
      %v1026 = vmul.f32 %v502, %v534
      %v1027 = vmul.f32 %v503, %v535
      %v1028 = vmul.f32 %v504, %v536
      %v1029 = vmul.f32 %v505, %v537
      %v1030 = vmul.f32 %v506, %v538
      %v1031 = vmul.f32 %v507, %v539
      %v1032 = vmul.f32 %v508, %v540
      %v1033 = vmul.f32 %v509, %v541
      %v1034 = vmul.f32 %v510, %v542
      %v1035 = vmul.f32 %v511, %v543
      %v1036 = vmul.f32 %v512, %v544
      %v1037 = vmul.f32 %v513, %v545
      %v1038 = vmul.f32 %v514, %v546
      %v1039 = vmul.f32 %v515, %v547
      %v1040 = vmul.f32 %v516, %v548
      %v1041 = vmul.f32 %v517, %v549
      %v1042 = vmul.f32 %v518, %v550
      %v1043 = vmul.f32 %v519, %v551
      %v1044 = vmul.f32 %v520, %v552
      %v1045 = vmul.f32 %v521, %v553
      %v1046 = vmul.f32 %v522, %v554
      %v1047 = vmul.f32 %v523, %v555
      %v1048 = vmul.f32 %v524, %v556
      %v1049 = vmul.f32 %v525, %v557
      %v1050 = vmul.f32 %v526, %v558
      %v1051 = vmul.f32 %v527, %v559
      %v1052 = vmul.f32 %v528, %v560
      %v1053 = vmul.f32 %v529, %v561
      %v1054 = vmul.f32 %v530, %v562
      %v1055 = vmul.f32 %v531, %v563
      %v1056 = vld [vmem:[%s5] sm:$0xff]
      %v1057 = vld [vmem:[%s5 + $0x8] sm:$0xff]
      %v1058 = vld [vmem:[%s5 + $0x10] sm:$0xff]
      %v1059 = vld [vmem:[%s5 + $0x18] sm:$0xff]
      %v1060 = vld [vmem:[%s6] sm:$0x1]
      %v1062 = vlaneseq
      %v1063 = vshrl.u32 %v1062, 7
      %v1064 = vsub.s32 0, %v1063
      %v1065 = vrot.slane %v1060, %v1064
      %v1068 = vsel %vm464, %v1024, 0
      %v1071 = vsel %vm464, %v1025, 0
      %v1074 = vsel %vm464, %v1026, 0
      %v1077 = vsel %vm464, %v1027, 0
      %v1080 = vsel %vm464, %v1028, 0
      %v1083 = vsel %vm464, %v1029, 0
      %v1086 = vsel %vm464, %v1030, 0
      %v1089 = vsel %vm464, %v1031, 0
      %v1092 = vsel %vm464, %v1032, 0
      %v1095 = vsel %vm464, %v1033, 0
      %v1098 = vsel %vm464, %v1034, 0
      %v1101 = vsel %vm464, %v1035, 0
      %v1104 = vsel %vm464, %v1036, 0
      %v1107 = vsel %vm464, %v1037, 0
      %v1110 = vsel %vm464, %v1038, 0
      %v1113 = vsel %vm464, %v1039, 0
      %v1116 = vsel %vm464, %v1040, 0
      %v1119 = vsel %vm464, %v1041, 0
      %v1122 = vsel %vm464, %v1042, 0
      %v1125 = vsel %vm464, %v1043, 0
      %v1128 = vsel %vm464, %v1044, 0
      %v1131 = vsel %vm464, %v1045, 0
      %v1134 = vsel %vm464, %v1046, 0
      %v1137 = vsel %vm464, %v1047, 0
      %v1140 = vsel %vm464, %v1048, 0
      %v1143 = vsel %vm464, %v1049, 0
      %v1146 = vsel %vm464, %v1050, 0
      %v1149 = vsel %vm464, %v1051, 0
      %v1152 = vsel %vm464, %v1052, 0
      %v1155 = vsel %vm464, %v1053, 0
      %v1158 = vsel %vm464, %v1054, 0
      %v1161 = vsel %vm464, %v1055, 0
      %1163 = vmatprep.subr.mxu0 0.0
      %1164 = vmatpush1.msra.mxu0 %v1056
      %1165 = vmatprep.subr.mxu0 0.0
      %1166 = vmatpush1.msra.mxu0 %v1057
      %1167 = vmatprep.subr.mxu0 0.0
      %1168 = vmatpush1.msra.mxu0 %v1058
      %1169 = vmatprep.subr.mxu0 0.0
      %1170 = vmatpush1.msra.mxu0 %v1059
      %1171 = vmatprep.subr.mxu0 0.0
      %1172 = vmatpush1.msra.mxu0 0.0
      %1173 = vmatprep.subr.mxu0 0.0
      %1174 = vmatpush1.msra.mxu0 0.0
      %1175 = vmatprep.subr.mxu0 0.0
      %1176 = vmatpush1.msra.mxu0 0.0
      %1177 = vmatprep.subr.mxu0 0.0
      %1178 = vmatpush1.msra.mxu0 0.0
      %1179 = vmatprep.subr.mxu0 0.0
      %1180 = vmatpush1.msra.mxu0 0.0
      %1181 = vmatprep.subr.mxu0 0.0
      %1182 = vmatpush1.msra.mxu0 0.0
      %1183 = vmatprep.subr.mxu0 0.0
      %1184 = vmatpush1.msra.mxu0 0.0
      %1185 = vmatprep.subr.mxu0 0.0
      %1186 = vmatpush1.msra.mxu0 0.0
      %1187 = vmatprep.subr.mxu0 0.0
      %1188 = vmatpush1.msra.mxu0 0.0
      %1189 = vmatprep.subr.mxu0 0.0
      %1190 = vmatpush1.msra.mxu0 0.0
      %1191 = vmatprep.subr.mxu0 0.0
      %1192 = vmatpush1.msra.mxu0 0.0
      %1193 = vmatprep.subr.mxu0 0.0
      %1194 = vmatpush1.msra.mxu0 0.0
      %1195 = vmatprep.subr.mxu0 0.0
      %1196 = vmatpush1.msra.mxu0 0.0
      %1197 = vmatprep.subr.mxu0 0.0
      %1198 = vmatpush1.msra.mxu0 0.0
      %1199 = vmatprep.subr.mxu0 0.0
      %1200 = vmatpush1.msra.mxu0 0.0
      %1201 = vmatprep.subr.mxu0 0.0
      %1202 = vmatpush1.msra.mxu0 0.0
      %1203 = vmatprep.subr.mxu0 0.0
      %1204 = vmatpush1.msra.mxu0 0.0
      %1205 = vmatprep.subr.mxu0 0.0
      %1206 = vmatpush1.msra.mxu0 0.0
      %1207 = vmatprep.subr.mxu0 0.0
      %1208 = vmatpush1.msra.mxu0 0.0
      %1209 = vmatprep.subr.mxu0 0.0
      %1210 = vmatpush1.msra.mxu0 0.0
      %1211 = vmatprep.subr.mxu0 0.0
      %1212 = vmatpush1.msra.mxu0 0.0
      %1213 = vmatprep.subr.mxu0 0.0
      %1214 = vmatpush1.msra.mxu0 0.0
      %1215 = vmatprep.subr.mxu0 0.0
      %1216 = vmatpush1.msra.mxu0 0.0
      %1217 = vmatprep.subr.mxu0 0.0
      %1218 = vmatpush1.msra.mxu0 0.0
      %1219 = vmatprep.subr.mxu0 0.0
      %1220 = vmatpush1.msra.mxu0 0.0
      %1221 = vmatprep.subr.mxu0 0.0
      %1222 = vmatpush1.msra.mxu0 0.0
      %1223 = vmatprep.subr.mxu0 0.0
      %1224 = vmatpush1.msra.mxu0 0.0
      %1225 = vmatprep.subr.mxu0 0.0
      %1226 = vmatpush1.msra.mxu0 0.0
      %1227 = vmatprep.mubr.f32.mxu0 0.0
      %1228 = vmatmul.mubr.f32.gmra.mrb[0].mxu0 %v1068
      %v1229 = vpop.f32.mrb[0].mxu0
      %v1230 = vadd.f32 %v1065, %v1229
      %v1231 = vpop.f32.mrb[0].mxu0
      %1232 = vmatprep.mubr.f32.mxu0 0.0
      %1233 = vmatmul.mubr.f32.gmra.mrb[0].mxu0 %v1071
      %v1234 = vpop.f32.mrb[0].mxu0
      %v1235 = vadd.f32 %v1065, %v1234
      %v1236 = vpop.f32.mrb[0].mxu0
      %1237 = vmatprep.mubr.f32.mxu0 0.0
      %1238 = vmatmul.mubr.f32.gmra.mrb[0].mxu0 %v1074
      %v1239 = vpop.f32.mrb[0].mxu0
      %v1240 = vadd.f32 %v1065, %v1239
      %v1241 = vpop.f32.mrb[0].mxu0
      %1242 = vmatprep.mubr.f32.mxu0 0.0
      %1243 = vmatmul.mubr.f32.gmra.mrb[0].mxu0 %v1077
      %v1244 = vpop.f32.mrb[0].mxu0
      %v1245 = vadd.f32 %v1065, %v1244
      %v1246 = vpop.f32.mrb[0].mxu0
      %1247 = vmatprep.mubr.f32.mxu0 0.0
      %1248 = vmatmul.mubr.f32.gmra.mrb[0].mxu0 %v1080
      %v1249 = vpop.f32.mrb[0].mxu0
      %v1250 = vadd.f32 %v1065, %v1249
      %v1251 = vpop.f32.mrb[0].mxu0
      %1252 = vmatprep.mubr.f32.mxu0 0.0
      %1253 = vmatmul.mubr.f32.gmra.mrb[0].mxu0 %v1083
      %v1254 = vpop.f32.mrb[0].mxu0
      %v1255 = vadd.f32 %v1065, %v1254
      %v1256 = vpop.f32.mrb[0].mxu0
      %1257 = vmatprep.mubr.f32.mxu0 0.0
      %1258 = vmatmul.mubr.f32.gmra.mrb[0].mxu0 %v1086
      %v1259 = vpop.f32.mrb[0].mxu0
      %v1260 = vadd.f32 %v1065, %v1259
      %v1261 = vpop.f32.mrb[0].mxu0
      %1262 = vmatprep.mubr.f32.mxu0 0.0
      %1263 = vmatmul.mubr.f32.gmra.mrb[0].mxu0 %v1089
      %v1264 = vpop.f32.mrb[0].mxu0
      %v1265 = vadd.f32 %v1065, %v1264
      %v1266 = vpop.f32.mrb[0].mxu0
      %1267 = vmatprep.mubr.f32.mxu0 0.0
      %1268 = vmatmul.mubr.f32.gmra.mrb[0].mxu0 %v1092
      %v1269 = vpop.f32.mrb[0].mxu0
      %v1270 = vadd.f32 %v1065, %v1269
      %v1271 = vpop.f32.mrb[0].mxu0
      %1272 = vmatprep.mubr.f32.mxu0 0.0
      %1273 = vmatmul.mubr.f32.gmra.mrb[0].mxu0 %v1095
      %v1274 = vpop.f32.mrb[0].mxu0
      %v1275 = vadd.f32 %v1065, %v1274
      %v1276 = vpop.f32.mrb[0].mxu0
      %1277 = vmatprep.mubr.f32.mxu0 0.0
      %1278 = vmatmul.mubr.f32.gmra.mrb[0].mxu0 %v1098
      %v1279 = vpop.f32.mrb[0].mxu0
      %v1280 = vadd.f32 %v1065, %v1279
      %v1281 = vpop.f32.mrb[0].mxu0
      %1282 = vmatprep.mubr.f32.mxu0 0.0
      %1283 = vmatmul.mubr.f32.gmra.mrb[0].mxu0 %v1101
      %v1284 = vpop.f32.mrb[0].mxu0
      %v1285 = vadd.f32 %v1065, %v1284
      %v1286 = vpop.f32.mrb[0].mxu0
      %1287 = vmatprep.mubr.f32.mxu0 0.0
      %1288 = vmatmul.mubr.f32.gmra.mrb[0].mxu0 %v1104
      %v1289 = vpop.f32.mrb[0].mxu0
      %v1290 = vadd.f32 %v1065, %v1289
      %v1291 = vpop.f32.mrb[0].mxu0
      %1292 = vmatprep.mubr.f32.mxu0 0.0
      %1293 = vmatmul.mubr.f32.gmra.mrb[0].mxu0 %v1107
      %v1294 = vpop.f32.mrb[0].mxu0
      %v1295 = vadd.f32 %v1065, %v1294
      %v1296 = vpop.f32.mrb[0].mxu0
      %1297 = vmatprep.mubr.f32.mxu0 0.0
      %1298 = vmatmul.mubr.f32.gmra.mrb[0].mxu0 %v1110
      %v1299 = vpop.f32.mrb[0].mxu0
      %v1300 = vadd.f32 %v1065, %v1299
      %v1301 = vpop.f32.mrb[0].mxu0
      %1302 = vmatprep.mubr.f32.mxu0 0.0
      %1303 = vmatmul.mubr.f32.gmra.mrb[0].mxu0 %v1113
      %v1304 = vpop.f32.mrb[0].mxu0
      %v1305 = vadd.f32 %v1065, %v1304
      %v1306 = vpop.f32.mrb[0].mxu0
      %1307 = vmatprep.mubr.f32.mxu0 0.0
      %1308 = vmatmul.mubr.f32.gmra.mrb[0].mxu0 %v1116
      %v1309 = vpop.f32.mrb[0].mxu0
      %v1310 = vadd.f32 %v1065, %v1309
      %v1311 = vpop.f32.mrb[0].mxu0
      %1312 = vmatprep.mubr.f32.mxu0 0.0
      %1313 = vmatmul.mubr.f32.gmra.mrb[0].mxu0 %v1119
      %v1314 = vpop.f32.mrb[0].mxu0
      %v1315 = vadd.f32 %v1065, %v1314
      %v1316 = vpop.f32.mrb[0].mxu0
      %1317 = vmatprep.mubr.f32.mxu0 0.0
      %1318 = vmatmul.mubr.f32.gmra.mrb[0].mxu0 %v1122
      %v1319 = vpop.f32.mrb[0].mxu0
      %v1320 = vadd.f32 %v1065, %v1319
      %v1321 = vpop.f32.mrb[0].mxu0
      %1322 = vmatprep.mubr.f32.mxu0 0.0
      %1323 = vmatmul.mubr.f32.gmra.mrb[0].mxu0 %v1125
      %v1324 = vpop.f32.mrb[0].mxu0
      %v1325 = vadd.f32 %v1065, %v1324
      %v1326 = vpop.f32.mrb[0].mxu0
      %1327 = vmatprep.mubr.f32.mxu0 0.0
      %1328 = vmatmul.mubr.f32.gmra.mrb[0].mxu0 %v1128
      %v1329 = vpop.f32.mrb[0].mxu0
      %v1330 = vadd.f32 %v1065, %v1329
      %v1331 = vpop.f32.mrb[0].mxu0
      %1332 = vmatprep.mubr.f32.mxu0 0.0
      %1333 = vmatmul.mubr.f32.gmra.mrb[0].mxu0 %v1131
      %v1334 = vpop.f32.mrb[0].mxu0
      %v1335 = vadd.f32 %v1065, %v1334
      %v1336 = vpop.f32.mrb[0].mxu0
      %1337 = vmatprep.mubr.f32.mxu0 0.0
      %1338 = vmatmul.mubr.f32.gmra.mrb[0].mxu0 %v1134
      %v1339 = vpop.f32.mrb[0].mxu0
      %v1340 = vadd.f32 %v1065, %v1339
      %v1341 = vpop.f32.mrb[0].mxu0
      %1342 = vmatprep.mubr.f32.mxu0 0.0
      %1343 = vmatmul.mubr.f32.gmra.mrb[0].mxu0 %v1137
      %v1344 = vpop.f32.mrb[0].mxu0
      %v1345 = vadd.f32 %v1065, %v1344
      %v1346 = vpop.f32.mrb[0].mxu0
      %1347 = vmatprep.mubr.f32.mxu0 0.0
      %1348 = vmatmul.mubr.f32.gmra.mrb[0].mxu0 %v1140
      %v1349 = vpop.f32.mrb[0].mxu0
      %v1350 = vadd.f32 %v1065, %v1349
      %v1351 = vpop.f32.mrb[0].mxu0
      %1352 = vmatprep.mubr.f32.mxu0 0.0
      %1353 = vmatmul.mubr.f32.gmra.mrb[0].mxu0 %v1143
      %v1354 = vpop.f32.mrb[0].mxu0
      %v1355 = vadd.f32 %v1065, %v1354
      %v1356 = vpop.f32.mrb[0].mxu0
      %1357 = vmatprep.mubr.f32.mxu0 0.0
      %1358 = vmatmul.mubr.f32.gmra.mrb[0].mxu0 %v1146
      %v1359 = vpop.f32.mrb[0].mxu0
      %v1360 = vadd.f32 %v1065, %v1359
      %v1361 = vpop.f32.mrb[0].mxu0
      %1362 = vmatprep.mubr.f32.mxu0 0.0
      %1363 = vmatmul.mubr.f32.gmra.mrb[0].mxu0 %v1149
      %v1364 = vpop.f32.mrb[0].mxu0
      %v1365 = vadd.f32 %v1065, %v1364
      %v1366 = vpop.f32.mrb[0].mxu0
      %1367 = vmatprep.mubr.f32.mxu0 0.0
      %1368 = vmatmul.mubr.f32.gmra.mrb[0].mxu0 %v1152
      %v1369 = vpop.f32.mrb[0].mxu0
      %v1370 = vadd.f32 %v1065, %v1369
      %v1371 = vpop.f32.mrb[0].mxu0
      %1372 = vmatprep.mubr.f32.mxu0 0.0
      %1373 = vmatmul.mubr.f32.gmra.mrb[0].mxu0 %v1155
      %v1374 = vpop.f32.mrb[0].mxu0
      %v1375 = vadd.f32 %v1065, %v1374
      %v1376 = vpop.f32.mrb[0].mxu0
      %1377 = vmatprep.mubr.f32.mxu0 0.0
      %1378 = vmatmul.mubr.f32.gmra.mrb[0].mxu0 %v1158
      %v1379 = vpop.f32.mrb[0].mxu0
      %v1380 = vadd.f32 %v1065, %v1379
      %v1381 = vpop.f32.mrb[0].mxu0
      %1382 = vmatprep.mubr.f32.mxu0 0.0
      %1383 = vmatmul.mubr.f32.gmra.mrb[0].mxu0 %v1161
      %v1384 = vpop.f32.mrb[0].mxu0
      %v1385 = vadd.f32 %v1065, %v1384
      %v1386 = vpop.f32.mrb[0].mxu0
      %1387 = vdwg.mxu0
      %vm1388 = vcmp.ge.f32.partialorder %v1230, 0.0
      %vm1389 = vcmp.ge.f32.partialorder %v1235, 0.0
      %vm1390 = vcmp.ge.f32.partialorder %v1240, 0.0
      %vm1391 = vcmp.ge.f32.partialorder %v1245, 0.0
      %vm1392 = vcmp.ge.f32.partialorder %v1250, 0.0
      %vm1393 = vcmp.ge.f32.partialorder %v1255, 0.0
      %vm1394 = vcmp.ge.f32.partialorder %v1260, 0.0
      %vm1395 = vcmp.ge.f32.partialorder %v1265, 0.0
      %vm1396 = vcmp.ge.f32.partialorder %v1270, 0.0
      %vm1397 = vcmp.ge.f32.partialorder %v1275, 0.0
      %vm1398 = vcmp.ge.f32.partialorder %v1280, 0.0
      %vm1399 = vcmp.ge.f32.partialorder %v1285, 0.0
      %vm1400 = vcmp.ge.f32.partialorder %v1290, 0.0
      %vm1401 = vcmp.ge.f32.partialorder %v1295, 0.0
      %vm1402 = vcmp.ge.f32.partialorder %v1300, 0.0
      %vm1403 = vcmp.ge.f32.partialorder %v1305, 0.0
      %vm1404 = vcmp.ge.f32.partialorder %v1310, 0.0
      %vm1405 = vcmp.ge.f32.partialorder %v1315, 0.0
      %vm1406 = vcmp.ge.f32.partialorder %v1320, 0.0
      %vm1407 = vcmp.ge.f32.partialorder %v1325, 0.0
      %vm1408 = vcmp.ge.f32.partialorder %v1330, 0.0
      %vm1409 = vcmp.ge.f32.partialorder %v1335, 0.0
      %vm1410 = vcmp.ge.f32.partialorder %v1340, 0.0
      %vm1411 = vcmp.ge.f32.partialorder %v1345, 0.0
      %vm1412 = vcmp.ge.f32.partialorder %v1350, 0.0
      %vm1413 = vcmp.ge.f32.partialorder %v1355, 0.0
      %vm1414 = vcmp.ge.f32.partialorder %v1360, 0.0
      %vm1415 = vcmp.ge.f32.partialorder %v1365, 0.0
      %vm1416 = vcmp.ge.f32.partialorder %v1370, 0.0
      %vm1417 = vcmp.ge.f32.partialorder %v1375, 0.0
      %vm1418 = vcmp.ge.f32.partialorder %v1380, 0.0
      %vm1419 = vcmp.ge.f32.partialorder %v1385, 0.0
      %v1420 = vmul.f32 %v1230, 0.01
      %v1421 = vmul.f32 %v1235, 0.01
      %v1422 = vmul.f32 %v1240, 0.01
      %v1423 = vmul.f32 %v1245, 0.01
      %v1424 = vmul.f32 %v1250, 0.01
      %v1425 = vmul.f32 %v1255, 0.01
      %v1426 = vmul.f32 %v1260, 0.01
      %v1427 = vmul.f32 %v1265, 0.01
      %v1428 = vmul.f32 %v1270, 0.01
      %v1429 = vmul.f32 %v1275, 0.01
      %v1430 = vmul.f32 %v1280, 0.01
      %v1431 = vmul.f32 %v1285, 0.01
      %v1432 = vmul.f32 %v1290, 0.01
      %v1433 = vmul.f32 %v1295, 0.01
      %v1434 = vmul.f32 %v1300, 0.01
      %v1435 = vmul.f32 %v1305, 0.01
      %v1436 = vmul.f32 %v1310, 0.01
      %v1437 = vmul.f32 %v1315, 0.01
      %v1438 = vmul.f32 %v1320, 0.01
      %v1439 = vmul.f32 %v1325, 0.01
      %v1440 = vmul.f32 %v1330, 0.01
      %v1441 = vmul.f32 %v1335, 0.01
      %v1442 = vmul.f32 %v1340, 0.01
      %v1443 = vmul.f32 %v1345, 0.01
      %v1444 = vmul.f32 %v1350, 0.01
      %v1445 = vmul.f32 %v1355, 0.01
      %v1446 = vmul.f32 %v1360, 0.01
      %v1447 = vmul.f32 %v1365, 0.01
      %v1448 = vmul.f32 %v1370, 0.01
      %v1449 = vmul.f32 %v1375, 0.01
      %v1450 = vmul.f32 %v1380, 0.01
      %v1451 = vmul.f32 %v1385, 0.01
      %v1452 = vsel %vm1388, %v1230, %v1420
      %v1453 = vsel %vm1389, %v1235, %v1421
      %v1454 = vsel %vm1390, %v1240, %v1422
      %v1455 = vsel %vm1391, %v1245, %v1423
      %v1456 = vsel %vm1392, %v1250, %v1424
      %v1457 = vsel %vm1393, %v1255, %v1425
      %v1458 = vsel %vm1394, %v1260, %v1426
      %v1459 = vsel %vm1395, %v1265, %v1427
      %v1460 = vsel %vm1396, %v1270, %v1428
      %v1461 = vsel %vm1397, %v1275, %v1429
      %v1462 = vsel %vm1398, %v1280, %v1430
      %v1463 = vsel %vm1399, %v1285, %v1431
      %v1464 = vsel %vm1400, %v1290, %v1432
      %v1465 = vsel %vm1401, %v1295, %v1433
      %v1466 = vsel %vm1402, %v1300, %v1434
      %v1467 = vsel %vm1403, %v1305, %v1435
      %v1468 = vsel %vm1404, %v1310, %v1436
      %v1469 = vsel %vm1405, %v1315, %v1437
      %v1470 = vsel %vm1406, %v1320, %v1438
      %v1471 = vsel %vm1407, %v1325, %v1439
      %v1472 = vsel %vm1408, %v1330, %v1440
      %v1473 = vsel %vm1409, %v1335, %v1441
      %v1474 = vsel %vm1410, %v1340, %v1442
      %v1475 = vsel %vm1411, %v1345, %v1443
      %v1476 = vsel %vm1412, %v1350, %v1444
      %v1477 = vsel %vm1413, %v1355, %v1445
      %v1478 = vsel %vm1414, %v1360, %v1446
      %v1479 = vsel %vm1415, %v1365, %v1447
      %v1480 = vsel %vm1416, %v1370, %v1448
      %v1481 = vsel %vm1417, %v1375, %v1449
      %v1482 = vsel %vm1418, %v1380, %v1450
      %v1483 = vsel %vm1419, %v1385, %v1451
      %v1484 = vadd.f32 %v992, %v1452
      %v1485 = vadd.f32 %v993, %v1453
      %v1486 = vadd.f32 %v994, %v1454
      %v1487 = vadd.f32 %v995, %v1455
      %v1488 = vadd.f32 %v996, %v1456
      %v1489 = vadd.f32 %v997, %v1457
      %v1490 = vadd.f32 %v998, %v1458
      %v1491 = vadd.f32 %v999, %v1459
      %v1492 = vadd.f32 %v1000, %v1460
      %v1493 = vadd.f32 %v1001, %v1461
      %v1494 = vadd.f32 %v1002, %v1462
      %v1495 = vadd.f32 %v1003, %v1463
      %v1496 = vadd.f32 %v1004, %v1464
      %v1497 = vadd.f32 %v1005, %v1465
      %v1498 = vadd.f32 %v1006, %v1466
      %v1499 = vadd.f32 %v1007, %v1467
      %v1500 = vadd.f32 %v1008, %v1468
      %v1501 = vadd.f32 %v1009, %v1469
      %v1502 = vadd.f32 %v1010, %v1470
      %v1503 = vadd.f32 %v1011, %v1471
      %v1504 = vadd.f32 %v1012, %v1472
      %v1505 = vadd.f32 %v1013, %v1473
      %v1506 = vadd.f32 %v1014, %v1474
      %v1507 = vadd.f32 %v1015, %v1475
      %v1508 = vadd.f32 %v1016, %v1476
      %v1509 = vadd.f32 %v1017, %v1477
      %v1510 = vadd.f32 %v1018, %v1478
      %v1511 = vadd.f32 %v1019, %v1479
      %v1512 = vadd.f32 %v1020, %v1480
      %v1513 = vadd.f32 %v1021, %v1481
      %v1514 = vadd.f32 %v1022, %v1482
      %v1515 = vadd.f32 %v1023, %v1483
      %1516 = vst.msk [vmem:[%s7] sm:$0xff] %vm464, %v1484
      %1517 = vst.msk [vmem:[%s7 + $0x8] sm:$0xff] %vm464, %v1485
      %1518 = vst.msk [vmem:[%s7 + $0x10] sm:$0xff] %vm464, %v1486
      %1519 = vst.msk [vmem:[%s7 + $0x18] sm:$0xff] %vm464, %v1487
      %1520 = vst.msk [vmem:[%s7 + $0x20] sm:$0xff] %vm464, %v1488
      %1521 = vst.msk [vmem:[%s7 + $0x28] sm:$0xff] %vm464, %v1489
      %1522 = vst.msk [vmem:[%s7 + $0x30] sm:$0xff] %vm464, %v1490
      %1523 = vst.msk [vmem:[%s7 + $0x38] sm:$0xff] %vm464, %v1491
      %1524 = vst.msk [vmem:[%s7 + $0x40] sm:$0xff] %vm464, %v1492
      %1525 = vst.msk [vmem:[%s7 + $0x48] sm:$0xff] %vm464, %v1493
      %1526 = vst.msk [vmem:[%s7 + $0x50] sm:$0xff] %vm464, %v1494
      %1527 = vst.msk [vmem:[%s7 + $0x58] sm:$0xff] %vm464, %v1495
      %1528 = vst.msk [vmem:[%s7 + $0x60] sm:$0xff] %vm464, %v1496
      %1529 = vst.msk [vmem:[%s7 + $0x68] sm:$0xff] %vm464, %v1497
      %1530 = vst.msk [vmem:[%s7 + $0x70] sm:$0xff] %vm464, %v1498
      %1531 = vst.msk [vmem:[%s7 + $0x78] sm:$0xff] %vm464, %v1499
      %1532 = vst.msk [vmem:[%s7 + $0x80] sm:$0xff] %vm464, %v1500
      %1533 = vst.msk [vmem:[%s7 + $0x88] sm:$0xff] %vm464, %v1501
      %1534 = vst.msk [vmem:[%s7 + $0x90] sm:$0xff] %vm464, %v1502
      %1535 = vst.msk [vmem:[%s7 + $0x98] sm:$0xff] %vm464, %v1503
      %1536 = vst.msk [vmem:[%s7 + $0xa0] sm:$0xff] %vm464, %v1504
      %1537 = vst.msk [vmem:[%s7 + $0xa8] sm:$0xff] %vm464, %v1505
      %1538 = vst.msk [vmem:[%s7 + $0xb0] sm:$0xff] %vm464, %v1506
      %1539 = vst.msk [vmem:[%s7 + $0xb8] sm:$0xff] %vm464, %v1507
      %1540 = vst.msk [vmem:[%s7 + $0xc0] sm:$0xff] %vm464, %v1508
      %1541 = vst.msk [vmem:[%s7 + $0xc8] sm:$0xff] %vm464, %v1509
      %1542 = vst.msk [vmem:[%s7 + $0xd0] sm:$0xff] %vm464, %v1510
      %1543 = vst.msk [vmem:[%s7 + $0xd8] sm:$0xff] %vm464, %v1511
      %1544 = vst.msk [vmem:[%s7 + $0xe0] sm:$0xff] %vm464, %v1512
      %1545 = vst.msk [vmem:[%s7 + $0xe8] sm:$0xff] %vm464, %v1513
      %1546 = vst.msk [vmem:[%s7 + $0xf0] sm:$0xff] %vm464, %v1514
      %1547 = vst.msk [vmem:[%s7 + $0xf8] sm:$0xff] %vm464, %v1515
    $region41: #{bi_aggregator.1} parent=1 // pred_fallthru
      _
    // Predicated region
    $region42: #{bi_aggregator.1} parent=1 // pred_check
      _
    $region43: #{bi_aggregator.1} parent=1 // pred_check_branch
      %1549 = sbr.rel (0) target = $region45
    $region44: #{bi_aggregator.1} parent=1 // pred_region
      _
    $region45: #{bi_aggregator.1} parent=1 // pred_fallthru
      _
    // Predicated region
    $region46: #{bi_aggregator.1} parent=1 // pred_check
      _
    $region47: #{bi_aggregator.1} parent=1 // pred_check_branch
      %1551 = sbr.rel (0) target = $region49
    $region48: #{bi_aggregator.1} parent=1 // pred_region
      _
    $region49: #{bi_aggregator.1} parent=1 // pred_fallthru
      _
    %1552 = vsyncpa [#allocation4], 1

</llo_original>
